<compile_context>
chip_gen: v7x
topology: tpu7x:2x2x1
jax: 0.10.0
libtpu: 0.0.40
codegen_flags: <defaults>
</compile_context>

<pallas_src>
import functools

import jax
import jax.numpy as jnp
import numpy as np
from jax.experimental import pallas as pl
from jax.experimental.pallas import tpu as pltpu

# Tap offsets of a 3x3 kernel, in (ky, kx) order (dy = ky-1, dx = kx-1).
_TAPS = tuple((dy, dx) for dy in (-1, 0, 1) for dx in (-1, 0, 1))


def _tap_masks(height, width):
    """(8, H*W) float32 0/1 masks, one per NON-center tap (in _TAPS order):
    mask[t, p] == 1 iff pixel p shifted by tap t stays inside the image
    (this IS the padding=1 zero ring)."""
    y, x = np.mgrid[0:height, 0:width]
    rows = []
    for dy, dx in _TAPS:
        if dy == 0 and dx == 0:
            continue  # center tap never needs masking -> keep exactly one sublane tile
        valid = (y + dy >= 0) & (y + dy < height) & (x + dx >= 0) & (x + dx < width)
        rows.append(valid.reshape(-1))
    return np.stack(rows).astype(np.float32)


def _pick_imgs_per_step(n_images, hw, *, max_lanes=512, min_steps=2):
    """Largest divisor of n_images such that the per-step lane width stays
    register-friendly (conv1 patch matrix + activation ~ the 64-vreg file) and,
    when possible, the grid keeps >= min_steps steps (v7x has 2 TensorCores)."""
    best = 1
    for ips in range(1, n_images + 1):
        if n_images % ips:
            continue
        if ips > 1 and ips * hw > max_lanes:
            continue
        if n_images >= min_steps and n_images // ips < min_steps:
            continue
        best = ips
    return best


def _generator_kernel(mask_ref, x_ref, w1_ref, b1_ref, w2_ref, b2_ref, out_ref,
                      *, width):
    # mask_ref: (8, L)            0/1 border masks, one per non-center tap
    # x_ref   : (1, cin_pad, L)   imgs_per_step images, channel-major, lane-dense
    # w1_ref  : (Cmid, 9*cin_pad) conv1 weights, taps folded into K
    # b1_ref  : (Cmid, 1)
    # w2_ref  : (9*Cout, Cmid)    conv2 weights, taps stacked along M
    # b2_ref  : (Cout, 1)
    # out_ref : (imgs, Cout, H*W) NCHW (flattened spatial) output block
    imgs, c_out, hw = out_ref.shape
    x = x_ref[0]                                     # (cin_pad, L), L = imgs*hw
    lanes = x.shape[-1]

    # ---- conv1 + ReLU: input-side im2col, ONE MXU matmul with K = 9*cin_pad ----
    pieces = []
    m = 0
    for dy, dx in _TAPS:
        if dy == 0 and dx == 0:
            pieces.append(x)                         # center tap: no shift, no mask
        else:
            # rolled[:, p] = x[:, (p + dy*W + dx) % L]; wrap lanes masked below.
            shift = (-(dy * width + dx)) % lanes     # static, non-negative
            rolled = pltpu.roll(x, shift=shift, axis=1)
            # (1, L) mask row broadcast over sublanes.  TODO(synk): a stride-0
            # sublane-broadcast load (pl.ds(m, C, stride=0)) would shave the
            # per-tap broadcast relayout if supported.
            pieces.append(rolled * mask_ref[m:m + 1, :])
            m += 1
    p1 = jnp.concatenate(pieces, axis=0)             # (9*cin_pad, L)
    h = jnp.dot(w1_ref[...], p1, preferred_element_type=jnp.float32)
    h = jnp.maximum(h + b1_ref[...], 0.0)            # (Cmid, L)

    # ---- conv2: ONE (9*Cout, Cmid) x (Cmid, L) matmul, then per-tap OUTPUT
    #      rotation + border mask + accumulate (no (9*Cmid, L) im2col, no spill).
    z = jnp.dot(w2_ref[...], h, preferred_element_type=jnp.float32)  # (9*Cout, L)
    center = _TAPS.index((0, 0))
    y = z[center * c_out:(center + 1) * c_out, :] + b2_ref[...]       # (Cout, L)
    m = 0
    for t, (dy, dx) in enumerate(_TAPS):
        if dy == 0 and dx == 0:
            continue
        shift = (-(dy * width + dx)) % lanes
        slab = pltpu.roll(z[t * c_out:(t + 1) * c_out, :], shift=shift, axis=1)
        y = y + slab * mask_ref[m:m + 1, :]
        m += 1

    # Per-image stores: hw is a multiple of 128 here, so lane slices are aligned.
    for i in range(imgs):
        out_ref[i, :, :] = y[:, i * hw:(i + 1) * hw].astype(out_ref.dtype)


@jax.jit
def generator_forward(x_nchw, w1, b1, w2, b2):
    """x_nchw: (N, 3, H, W) f32.  w1: (3,3,3,64) HWIO, w2: (3,3,64,3) HWIO.

    Returns (N, 3, H, W) f32, matching Generator.forward in PyTorch (NCHW).
    """
    N, Cin, H, W = x_nchw.shape
    Cmid, Cout = w1.shape[3], w2.shape[3]
    HW = H * W
    cin_pad = -(-Cin // 8) * 8                       # round channels up to a sublane tile

    imgs = _pick_imgs_per_step(N, HW)                # images folded onto lanes per step
    n_steps = N // imgs
    L = imgs * HW

    # NCHW -> (n_steps, cin_pad, imgs*HW): flatten spatial onto the lane axis and
    # fold imgs images per grid step; zero-pad the tiny channel axis for alignment.
    x_flat = jnp.pad(x_nchw.reshape(N, Cin, HW),
                     ((0, 0), (0, cin_pad - Cin), (0, 0)))
    x_steps = (x_flat.reshape(n_steps, imgs, cin_pad, HW)
               .transpose(0, 2, 1, 3).reshape(n_steps, cin_pad, L))

    # conv1: fold the 3x3 taps into the contraction dim.
    #   w1t[o, (ky*3+kx)*cin_pad + c] = w1[ky, kx, c, o]   (zero for padded c)
    w1t = jnp.pad(jnp.transpose(w1, (3, 0, 1, 2)),
                  ((0, 0), (0, 0), (0, 0), (0, cin_pad - Cin))
                  ).reshape(Cmid, 9 * cin_pad)
    # conv2: stack the taps along M instead of folding them into K.
    #   w2s[(ky*3+kx)*Cout + o, c] = w2[ky, kx, c, o]
    w2s = jnp.transpose(w2, (0, 1, 3, 2)).reshape(9 * Cout, Cmid)
    b1c = b1.reshape(Cmid, 1)
    b2c = b2.reshape(Cout, 1)

    # Per-image tap masks, tiled across the imgs folded onto the lane axis so
    # cross-image wrap lanes of the rotations stay zeroed.
    masks = jnp.asarray(np.tile(_tap_masks(H, W), (1, imgs)))        # (8, L)

    kernel = functools.partial(_generator_kernel, width=W)
    out_flat = pl.pallas_call(
        kernel,
        out_shape=jax.ShapeDtypeStruct((N, Cout, HW), jnp.float32),
        grid_spec=pltpu.PrefetchScalarGridSpec(
            num_scalar_prefetch=0,
            grid=(n_steps,),
            in_specs=[
                pl.BlockSpec((8, L), lambda s: (0, 0)),               # masks
                pl.BlockSpec((1, cin_pad, L), lambda s: (s, 0, 0)),   # x (imgs folded on lanes)
                pl.BlockSpec((Cmid, 9 * cin_pad), lambda s: (0, 0)),  # w1 (taps in K)
                pl.BlockSpec((Cmid, 1), lambda s: (0, 0)),            # b1
                pl.BlockSpec((9 * Cout, Cmid), lambda s: (0, 0)),     # w2 (taps in M)
                pl.BlockSpec((Cout, 1), lambda s: (0, 0)),            # b2
            ],
            out_specs=pl.BlockSpec((imgs, Cout, HW), lambda s: (s, 0, 0)),
        ),
        compiler_params=pltpu.CompilerParams(
            dimension_semantics=("parallel",)),
    )(masks, x_steps, w1t, b1c, w2s, b2c)

    # (N, Cout, H*W) -> (N, Cout, H, W): pure reshape, already NCHW.
    return out_flat.reshape(N, Cout, H, W)


def _init_params(key):
    """Deterministic init mimicking PyTorch Conv2d default (kaiming-uniform-ish)."""
    k1, k2, k3, k4 = jax.random.split(key, 4)
    bound1 = 1.0 / np.sqrt(3 * 9)
    w1 = jax.random.uniform(k1, (3, 3, 3, 64), jnp.float32, -bound1, bound1)   # HWIO
    b1 = jax.random.uniform(k2, (64,), jnp.float32, -bound1, bound1)
    bound2 = 1.0 / np.sqrt(64 * 9)
    w2 = jax.random.uniform(k3, (3, 3, 64, 3), jnp.float32, -bound2, bound2)   # HWIO
    b2 = jax.random.uniform(k4, (3,), jnp.float32, -bound2, bound2)
    return w1, b1, w2, b2


def _reference_forward(x_nchw, w1, b1, w2, b2):
    """Pure-JAX reference using lax.conv_general_dilated (NCHW, OIHW)."""
    w1_oihw = jnp.transpose(w1, (3, 2, 0, 1))
    w2_oihw = jnp.transpose(w2, (3, 2, 0, 1))
    y = jax.lax.conv_general_dilated(
        x_nchw, w1_oihw, window_strides=(1, 1), padding="SAME",
        dimension_numbers=("NCHW", "OIHW", "NCHW"))
    y = jnp.maximum(y + b1[None, :, None, None], 0.0)
    y = jax.lax.conv_general_dilated(
        y, w2_oihw, window_strides=(1, 1), padding="SAME",
        dimension_numbers=("NCHW", "OIHW", "NCHW"))
    return y + b2[None, :, None, None]


if __name__ == "__main__":
    key = jax.random.PRNGKey(0)
    kx, kp = jax.random.split(key)

    # batch=4 (exercises the images-on-lanes fold: 2 images/step, grid=(2,)),
    # 3 channels (fixed by the module), 16x16 images.
    x = jax.random.normal(kx, (4, 3, 16, 16), jnp.float32)
    w1, b1, w2, b2 = _init_params(kp)

    out = jax.block_until_ready(generator_forward(x, w1, b1, w2, b2))

    ref = _reference_forward(x, w1, b1, w2, b2)
    np.testing.assert_allclose(np.asarray(out), np.asarray(ref),
                               atol=1e-4, rtol=1e-4)
    print("KERNEL_OK")
</pallas_src>

<mosaic_0001>
module attributes {stable_mosaic.version = 11 : i64} {
  func.func @_generator_kernel(%arg0: i32, %arg1: memref<8x512xf32, #tpu.memory_space<vmem>>, %arg2: memref<1x8x512xf32, #tpu.memory_space<vmem>>, %arg3: memref<64x72xf32, #tpu.memory_space<vmem>>, %arg4: memref<64x1xf32, #tpu.memory_space<vmem>>, %arg5: memref<27x64xf32, #tpu.memory_space<vmem>>, %arg6: memref<3x1xf32, #tpu.memory_space<vmem>>, %arg7: memref<2x3x256xf32, #tpu.memory_space<vmem>>) attributes {dimension_semantics = [#tpu.dimension_semantics<parallel>], iteration_bounds = array<i64: 2>, scalar_prefetch = 0 : i64, scratch_operands = 0 : i64, tpu.core_type = #tpu.core_type<tc>, window_params = [{pipeline_mode = #tpu.pipeline_mode<synchronous>, transform_indices = @transform_0, window_bounds = array<i64: 8, 512>}, {transform_indices = @transform_1, window_bounds = array<i64: 1, 8, 512>}, {pipeline_mode = #tpu.pipeline_mode<synchronous>, transform_indices = @transform_2, window_bounds = array<i64: 64, 72>}, {pipeline_mode = #tpu.pipeline_mode<synchronous>, transform_indices = @transform_3, window_bounds = array<i64: 64, 1>}, {pipeline_mode = #tpu.pipeline_mode<synchronous>, transform_indices = @transform_4, window_bounds = array<i64: 27, 64>}, {pipeline_mode = #tpu.pipeline_mode<synchronous>, transform_indices = @transform_5, window_bounds = array<i64: 3, 1>}, {transform_indices = @transform_6, window_bounds = array<i64: 2, 3, 256>}]} {
    %c0 = arith.constant 0 : index
    %c0_0 = arith.constant 0 : index
    %c0_1 = arith.constant 0 : index
    %0 = vector.load %arg2[%c0, %c0_0, %c0_1] : memref<1x8x512xf32, #tpu.memory_space<vmem>>, vector<1x8x512xf32>
    %1 = vector.shape_cast %0 : vector<1x8x512xf32> to vector<8x512xf32>
    %c17_i32 = arith.constant 17 : i32
    %2 = tpu.dynamic_rotate %1 by %c17_i32 dim 1 : vector<8x512xf32>, i32 -> vector<8x512xf32>
    %c0_2 = arith.constant 0 : index
    %c0_3 = arith.constant 0 : index
    %3 = vector.load %arg1[%c0_2, %c0_3] : memref<8x512xf32, #tpu.memory_space<vmem>>, vector<1x512xf32>
    %4 = vector.broadcast %3 : vector<1x512xf32> to vector<8x512xf32>
    %5 = arith.mulf %2, %4 : vector<8x512xf32>
    %c16_i32 = arith.constant 16 : i32
    %6 = tpu.dynamic_rotate %1 by %c16_i32 dim 1 : vector<8x512xf32>, i32 -> vector<8x512xf32>
    %c1 = arith.constant 1 : index
    %c0_4 = arith.constant 0 : index
    %7 = vector.load %arg1[%c1, %c0_4] : memref<8x512xf32, #tpu.memory_space<vmem>>, vector<1x512xf32>
    %8 = vector.broadcast %7 : vector<1x512xf32> to vector<8x512xf32>
    %9 = arith.mulf %6, %8 : vector<8x512xf32>
    %c15_i32 = arith.constant 15 : i32
    %10 = tpu.dynamic_rotate %1 by %c15_i32 dim 1 : vector<8x512xf32>, i32 -> vector<8x512xf32>
    %c2 = arith.constant 2 : index
    %c0_5 = arith.constant 0 : index
    %11 = vector.load %arg1[%c2, %c0_5] : memref<8x512xf32, #tpu.memory_space<vmem>>, vector<1x512xf32>
    %12 = vector.broadcast %11 : vector<1x512xf32> to vector<8x512xf32>
    %13 = arith.mulf %10, %12 : vector<8x512xf32>
    %c1_i32 = arith.constant 1 : i32
    %14 = tpu.dynamic_rotate %1 by %c1_i32 dim 1 : vector<8x512xf32>, i32 -> vector<8x512xf32>
    %c3 = arith.constant 3 : index
    %c0_6 = arith.constant 0 : index
    %15 = vector.load %arg1[%c3, %c0_6] : memref<8x512xf32, #tpu.memory_space<vmem>>, vector<1x512xf32>
    %16 = vector.broadcast %15 : vector<1x512xf32> to vector<8x512xf32>
    %17 = arith.mulf %14, %16 : vector<8x512xf32>
    %c511_i32 = arith.constant 511 : i32
    %18 = tpu.dynamic_rotate %1 by %c511_i32 dim 1 : vector<8x512xf32>, i32 -> vector<8x512xf32>
    %c4 = arith.constant 4 : index
    %c0_7 = arith.constant 0 : index
    %19 = vector.load %arg1[%c4, %c0_7] : memref<8x512xf32, #tpu.memory_space<vmem>>, vector<1x512xf32>
    %20 = vector.broadcast %19 : vector<1x512xf32> to vector<8x512xf32>
    %21 = arith.mulf %18, %20 : vector<8x512xf32>
    %c497_i32 = arith.constant 497 : i32
    %22 = tpu.dynamic_rotate %1 by %c497_i32 dim 1 : vector<8x512xf32>, i32 -> vector<8x512xf32>
    %c5 = arith.constant 5 : index
    %c0_8 = arith.constant 0 : index
    %23 = vector.load %arg1[%c5, %c0_8] : memref<8x512xf32, #tpu.memory_space<vmem>>, vector<1x512xf32>
    %24 = vector.broadcast %23 : vector<1x512xf32> to vector<8x512xf32>
    %25 = arith.mulf %22, %24 : vector<8x512xf32>
    %c496_i32 = arith.constant 496 : i32
    %26 = tpu.dynamic_rotate %1 by %c496_i32 dim 1 : vector<8x512xf32>, i32 -> vector<8x512xf32>
    %c6 = arith.constant 6 : index
    %c0_9 = arith.constant 0 : index
    %27 = vector.load %arg1[%c6, %c0_9] : memref<8x512xf32, #tpu.memory_space<vmem>>, vector<1x512xf32>
    %28 = vector.broadcast %27 : vector<1x512xf32> to vector<8x512xf32>
    %29 = arith.mulf %26, %28 : vector<8x512xf32>
    %c495_i32 = arith.constant 495 : i32
    %30 = tpu.dynamic_rotate %1 by %c495_i32 dim 1 : vector<8x512xf32>, i32 -> vector<8x512xf32>
    %c7 = arith.constant 7 : index
    %c0_10 = arith.constant 0 : index
    %31 = vector.load %arg1[%c7, %c0_10] : memref<8x512xf32, #tpu.memory_space<vmem>>, vector<1x512xf32>
    %32 = vector.broadcast %31 : vector<1x512xf32> to vector<8x512xf32>
    %33 = arith.mulf %30, %32 : vector<8x512xf32>
    %34 = tpu.concatenate %5, %9, %13, %17, %1, %21, %25, %29, %33 in 0 : vector<8x512xf32>, vector<8x512xf32>, vector<8x512xf32>, vector<8x512xf32>, vector<8x512xf32>, vector<8x512xf32>, vector<8x512xf32>, vector<8x512xf32>, vector<8x512xf32> -> vector<72x512xf32>
    %c0_11 = arith.constant 0 : index
    %c0_12 = arith.constant 0 : index
    %35 = vector.load %arg3[%c0_11, %c0_12] : memref<64x72xf32, #tpu.memory_space<vmem>>, vector<64x72xf32>
    %cst = arith.constant dense<0.000000e+00> : vector<64x512xf32>
    %36 = tpu.matmul %35, %34, %cst {dimension_numbers = #tpu.dot_dimension_numbers<[1], [0], [0], [1], [0, 0, 1, 1], [], []>} : vector<64x72xf32>, vector<72x512xf32>, vector<64x512xf32> -> vector<64x512xf32>
    %c0_13 = arith.constant 0 : index
    %c0_14 = arith.constant 0 : index
    %37 = vector.load %arg4[%c0_13, %c0_14] : memref<64x1xf32, #tpu.memory_space<vmem>>, vector<64x1xf32>
    %38 = vector.broadcast %37 : vector<64x1xf32> to vector<64x512xf32>
    %39 = arith.addf %36, %38 : vector<64x512xf32>
    %cst_15 = arith.constant 0.000000e+00 : f32
    %40 = vector.broadcast %cst_15 : f32 to vector<64x512xf32>
    %41 = arith.maximumf %39, %40 : vector<64x512xf32>
    %c0_16 = arith.constant 0 : index
    %c0_17 = arith.constant 0 : index
    %42 = vector.load %arg5[%c0_16, %c0_17] : memref<27x64xf32, #tpu.memory_space<vmem>>, vector<27x64xf32>
    %cst_18 = arith.constant dense<0.000000e+00> : vector<27x512xf32>
    %43 = tpu.matmul %42, %41, %cst_18 {dimension_numbers = #tpu.dot_dimension_numbers<[1], [0], [0], [1], [0, 0, 1, 1], [], []>} : vector<27x64xf32>, vector<64x512xf32>, vector<27x512xf32> -> vector<27x512xf32>
    %44 = vector.extract_strided_slice %43 {offsets = [12, 0], sizes = [3, 512], strides = [1, 1]} : vector<27x512xf32> to vector<3x512xf32>
    %c0_19 = arith.constant 0 : index
    %c0_20 = arith.constant 0 : index
    %45 = vector.load %arg6[%c0_19, %c0_20] : memref<3x1xf32, #tpu.memory_space<vmem>>, vector<3x1xf32>
    %46 = vector.broadcast %45 : vector<3x1xf32> to vector<3x512xf32>
    %47 = arith.addf %44, %46 : vector<3x512xf32>
    %48 = vector.extract_strided_slice %43 {offsets = [0, 0], sizes = [3, 512], strides = [1, 1]} : vector<27x512xf32> to vector<3x512xf32>
    %c17_i32_21 = arith.constant 17 : i32
    %49 = tpu.dynamic_rotate %48 by %c17_i32_21 dim 1 : vector<3x512xf32>, i32 -> vector<3x512xf32>
    %c0_22 = arith.constant 0 : index
    %c0_23 = arith.constant 0 : index
    %50 = vector.load %arg1[%c0_22, %c0_23] : memref<8x512xf32, #tpu.memory_space<vmem>>, vector<1x512xf32>
    %51 = vector.broadcast %50 : vector<1x512xf32> to vector<3x512xf32>
    %52 = arith.mulf %49, %51 : vector<3x512xf32>
    %53 = arith.addf %47, %52 : vector<3x512xf32>
    %54 = vector.extract_strided_slice %43 {offsets = [3, 0], sizes = [3, 512], strides = [1, 1]} : vector<27x512xf32> to vector<3x512xf32>
    %c16_i32_24 = arith.constant 16 : i32
    %55 = tpu.dynamic_rotate %54 by %c16_i32_24 dim 1 : vector<3x512xf32>, i32 -> vector<3x512xf32>
    %c1_25 = arith.constant 1 : index
    %c0_26 = arith.constant 0 : index
    %56 = vector.load %arg1[%c1_25, %c0_26] : memref<8x512xf32, #tpu.memory_space<vmem>>, vector<1x512xf32>
    %57 = vector.broadcast %56 : vector<1x512xf32> to vector<3x512xf32>
    %58 = arith.mulf %55, %57 : vector<3x512xf32>
    %59 = arith.addf %53, %58 : vector<3x512xf32>
    %60 = vector.extract_strided_slice %43 {offsets = [6, 0], sizes = [3, 512], strides = [1, 1]} : vector<27x512xf32> to vector<3x512xf32>
    %c15_i32_27 = arith.constant 15 : i32
    %61 = tpu.dynamic_rotate %60 by %c15_i32_27 dim 1 : vector<3x512xf32>, i32 -> vector<3x512xf32>
    %c2_28 = arith.constant 2 : index
    %c0_29 = arith.constant 0 : index
    %62 = vector.load %arg1[%c2_28, %c0_29] : memref<8x512xf32, #tpu.memory_space<vmem>>, vector<1x512xf32>
    %63 = vector.broadcast %62 : vector<1x512xf32> to vector<3x512xf32>
    %64 = arith.mulf %61, %63 : vector<3x512xf32>
    %65 = arith.addf %59, %64 : vector<3x512xf32>
    %66 = vector.extract_strided_slice %43 {offsets = [9, 0], sizes = [3, 512], strides = [1, 1]} : vector<27x512xf32> to vector<3x512xf32>
    %c1_i32_30 = arith.constant 1 : i32
    %67 = tpu.dynamic_rotate %66 by %c1_i32_30 dim 1 : vector<3x512xf32>, i32 -> vector<3x512xf32>
    %c3_31 = arith.constant 3 : index
    %c0_32 = arith.constant 0 : index
    %68 = vector.load %arg1[%c3_31, %c0_32] : memref<8x512xf32, #tpu.memory_space<vmem>>, vector<1x512xf32>
    %69 = vector.broadcast %68 : vector<1x512xf32> to vector<3x512xf32>
    %70 = arith.mulf %67, %69 : vector<3x512xf32>
    %71 = arith.addf %65, %70 : vector<3x512xf32>
    %72 = vector.extract_strided_slice %43 {offsets = [15, 0], sizes = [3, 512], strides = [1, 1]} : vector<27x512xf32> to vector<3x512xf32>
    %c511_i32_33 = arith.constant 511 : i32
    %73 = tpu.dynamic_rotate %72 by %c511_i32_33 dim 1 : vector<3x512xf32>, i32 -> vector<3x512xf32>
    %c4_34 = arith.constant 4 : index
    %c0_35 = arith.constant 0 : index
    %74 = vector.load %arg1[%c4_34, %c0_35] : memref<8x512xf32, #tpu.memory_space<vmem>>, vector<1x512xf32>
    %75 = vector.broadcast %74 : vector<1x512xf32> to vector<3x512xf32>
    %76 = arith.mulf %73, %75 : vector<3x512xf32>
    %77 = arith.addf %71, %76 : vector<3x512xf32>
    %78 = vector.extract_strided_slice %43 {offsets = [18, 0], sizes = [3, 512], strides = [1, 1]} : vector<27x512xf32> to vector<3x512xf32>
    %c497_i32_36 = arith.constant 497 : i32
    %79 = tpu.dynamic_rotate %78 by %c497_i32_36 dim 1 : vector<3x512xf32>, i32 -> vector<3x512xf32>
    %c5_37 = arith.constant 5 : index
    %c0_38 = arith.constant 0 : index
    %80 = vector.load %arg1[%c5_37, %c0_38] : memref<8x512xf32, #tpu.memory_space<vmem>>, vector<1x512xf32>
    %81 = vector.broadcast %80 : vector<1x512xf32> to vector<3x512xf32>
    %82 = arith.mulf %79, %81 : vector<3x512xf32>
    %83 = arith.addf %77, %82 : vector<3x512xf32>
    %84 = vector.extract_strided_slice %43 {offsets = [21, 0], sizes = [3, 512], strides = [1, 1]} : vector<27x512xf32> to vector<3x512xf32>
    %c496_i32_39 = arith.constant 496 : i32
    %85 = tpu.dynamic_rotate %84 by %c496_i32_39 dim 1 : vector<3x512xf32>, i32 -> vector<3x512xf32>
    %c6_40 = arith.constant 6 : index
    %c0_41 = arith.constant 0 : index
    %86 = vector.load %arg1[%c6_40, %c0_41] : memref<8x512xf32, #tpu.memory_space<vmem>>, vector<1x512xf32>
    %87 = vector.broadcast %86 : vector<1x512xf32> to vector<3x512xf32>
    %88 = arith.mulf %85, %87 : vector<3x512xf32>
    %89 = arith.addf %83, %88 : vector<3x512xf32>
    %90 = vector.extract_strided_slice %43 {offsets = [24, 0], sizes = [3, 512], strides = [1, 1]} : vector<27x512xf32> to vector<3x512xf32>
    %c495_i32_42 = arith.constant 495 : i32
    %91 = tpu.dynamic_rotate %90 by %c495_i32_42 dim 1 : vector<3x512xf32>, i32 -> vector<3x512xf32>
    %c7_43 = arith.constant 7 : index
    %c0_44 = arith.constant 0 : index
    %92 = vector.load %arg1[%c7_43, %c0_44] : memref<8x512xf32, #tpu.memory_space<vmem>>, vector<1x512xf32>
    %93 = vector.broadcast %92 : vector<1x512xf32> to vector<3x512xf32>
    %94 = arith.mulf %91, %93 : vector<3x512xf32>
    %95 = arith.addf %89, %94 : vector<3x512xf32>
    %96 = vector.extract_strided_slice %95 {offsets = [0, 0], sizes = [3, 256], strides = [1, 1]} : vector<3x512xf32> to vector<3x256xf32>
    %c0_45 = arith.constant 0 : index
    %c0_46 = arith.constant 0 : index
    %c0_47 = arith.constant 0 : index
    %97 = vector.load %arg7[%c0_45, %c0_46, %c0_47] : memref<2x3x256xf32, #tpu.memory_space<vmem>>, vector<1x3x256xf32>
    %98 = vector.shape_cast %97 : vector<1x3x256xf32> to vector<3x256xf32>
    %99 = vector.shape_cast %96 : vector<3x256xf32> to vector<1x3x256xf32>
    tpu.vector_store %arg7[%c0_45, %c0_46, %c0_47], %99 {strides = array<i32>} : memref<2x3x256xf32, #tpu.memory_space<vmem>>, vector<1x3x256xf32>,
    %100 = vector.extract_strided_slice %95 {offsets = [0, 256], sizes = [3, 256], strides = [1, 1]} : vector<3x512xf32> to vector<3x256xf32>
    %c1_48 = arith.constant 1 : index
    %c0_49 = arith.constant 0 : index
    %c0_50 = arith.constant 0 : index
    %101 = vector.load %arg7[%c1_48, %c0_49, %c0_50] : memref<2x3x256xf32, #tpu.memory_space<vmem>>, vector<1x3x256xf32>
    %102 = vector.shape_cast %101 : vector<1x3x256xf32> to vector<3x256xf32>
    %103 = vector.shape_cast %100 : vector<3x256xf32> to vector<1x3x256xf32>
    tpu.vector_store %arg7[%c1_48, %c0_49, %c0_50], %103 {strides = array<i32>} : memref<2x3x256xf32, #tpu.memory_space<vmem>>, vector<1x3x256xf32>,
    return
  }
  func.func @transform_0(%arg0: i32) -> (i32, i32) {
    %c0_i32 = arith.constant 0 : i32
    %c0_i32_0 = arith.constant 0 : i32
    %c0_i32_1 = arith.constant 0 : i32
    return %c0_i32, %c0_i32_0 : i32, i32
  }
  func.func @transform_1(%arg0: i32) -> (i32, i32, i32) {
    %c0_i32 = arith.constant 0 : i32
    %c0_i32_0 = arith.constant 0 : i32
    %c0_i32_1 = arith.constant 0 : i32
    return %arg0, %c0_i32, %c0_i32_0 : i32, i32, i32
  }
  func.func @transform_2(%arg0: i32) -> (i32, i32) {
    %c0_i32 = arith.constant 0 : i32
    %c0_i32_0 = arith.constant 0 : i32
    %c0_i32_1 = arith.constant 0 : i32
    return %c0_i32, %c0_i32_0 : i32, i32
  }
  func.func @transform_3(%arg0: i32) -> (i32, i32) {
    %c0_i32 = arith.constant 0 : i32
    %c0_i32_0 = arith.constant 0 : i32
    %c0_i32_1 = arith.constant 0 : i32
    return %c0_i32, %c0_i32_0 : i32, i32
  }
  func.func @transform_4(%arg0: i32) -> (i32, i32) {
    %c0_i32 = arith.constant 0 : i32
    %c0_i32_0 = arith.constant 0 : i32
    %c0_i32_1 = arith.constant 0 : i32
    return %c0_i32, %c0_i32_0 : i32, i32
  }
  func.func @transform_5(%arg0: i32) -> (i32, i32) {
    %c0_i32 = arith.constant 0 : i32
    %c0_i32_0 = arith.constant 0 : i32
    %c0_i32_1 = arith.constant 0 : i32
    return %c0_i32, %c0_i32_0 : i32, i32
  }
  func.func @transform_6(%arg0: i32) -> (i32, i32, i32) {
    %c0_i32 = arith.constant 0 : i32
    %c0_i32_0 = arith.constant 0 : i32
    %c0_i32_1 = arith.constant 0 : i32
    return %arg0, %c0_i32, %c0_i32_0 : i32, i32, i32
  }
}

</mosaic_0001>

<llo_original>
// kernel: generator_forward.1
$region0: #{generator_forward.1}
  #allocation0 [shape = 'u32[]', space=smem, size = 0x4, offset = 0x4, fixed_abs, tag = 'smem constant byte address 0x4 - core index']
  #allocation1 [shape = 'u32[144,128]{1,0:T(1,128)}', space=vmem, size = 0x12000, scoped, tag = 'internal scratch']
  %s0 = inlined_call_operand.vmem [shape: f32[8,512], index: 0, kind: input, shape index: {}]
  %s1 = inlined_call_operand.vmem [shape: f32[2,8,512], index: 1, kind: input, shape index: {}]
  %s2 = inlined_call_operand.vmem [shape: f32[64,72], index: 2, kind: input, shape index: {}]
  %s3 = inlined_call_operand.vmem [shape: f32[64,1], index: 3, kind: input, shape index: {}]
  %s4 = inlined_call_operand.vmem [shape: f32[27,64], index: 4, kind: input, shape index: {}]
  %s5 = inlined_call_operand.vmem [shape: f32[3,1], index: 5, kind: input, shape index: {}]
  %s6 = inlined_call_operand.vmem [shape: f32[4,3,256], index: 6, kind: output, shape index: {}]
  %s7 = sld [smem:[#allocation0]]
  $region57: #{generator_forward.1} parent=0
    _
  %s9 = ssub.s32 1, %s7
  %s10 = scalar_select 0, %s9, %s7
  loop: start=0, step=1, limit=4
  $region2: #{generator_forward.1} parent=0 // loop_pre_header
    _
  $region3: #{generator_forward.1} parent=0 // loop_header
    %s12 = sphi 0, %s16
    %p13 = scmp.ge.s32.totalorder %s12, 4
    %s20 = sphi 0, %s20
    %s22 = sphi 0, %s20
    %s23 = sphi 0, %s22
    %s37 = sphi 0, %s23
    %s43 = sphi 0, %s45
    %s46 = sphi 0, %s43
    %s47 = sphi 0, %s46
    %s63 = sphi 0, %s47
    %s67 = sphi 0, %s67
    %s69 = sphi 0, %s67
    %s70 = sphi 0, %s69
    %s84 = sphi 0, %s70
    %s88 = sphi 0, %s88
    %s90 = sphi 0, %s88
    %s91 = sphi 0, %s90
    %s105 = sphi 0, %s91
    %s109 = sphi 0, %s109
    %s111 = sphi 0, %s109
    %s112 = sphi 0, %s111
    %s126 = sphi 0, %s112
    %s130 = sphi 0, %s130
    %s132 = sphi 0, %s130
    %s133 = sphi 0, %s132
    %s147 = sphi 0, %s133
    %s153 = sphi 0, %s155
    %s156 = sphi 0, %s153
    %s157 = sphi 0, %s156
    %s173 = sphi 0, %s157
  $region4: #{generator_forward.1} parent=0 // loop_header_branch
    %15 = sbr.rel (%p13) target = $region8
  $region5: #{generator_forward.1} parent=0 // loop_body
    %s17 = ssub.s32 %s12, 1
    %s18 = ssub.s32 %s12, 2
    %s19 = sadd.s32 %s12, 1
    %s21 = sadd.s32 %s20, 1
    %p24 = scmp.eq.s32.totalorder %s12, 1
    %p25 = scmp.ne.s32.totalorder %s20, %s22
    %p26 = scmp.eq.s32.totalorder %s12, 0
    %p27 = por %p25, %p26
    %p28 = scmp.ne.s32.totalorder %s20, %s22
    %p29 = scmp.eq.s32.totalorder %s17, 1
    %p30 = por %p28, %p29
    %p31 = scmp.ne.s32.totalorder %s22, %s23
    %p32 = scmp.eq.s32.totalorder %s17, 0
    %p33 = por %p31, %p32
    %p34 = scmp.ne.s32.totalorder %s22, %s23
    %p35 = scmp.eq.s32.totalorder %s18, 1
    %p36 = por %p34, %p35
    %p38 = scmp.ne.s32.totalorder %s23, %s37
    %p39 = scmp.eq.s32.totalorder %s18, 0
    %p40 = por %p38, %p39
    %s41 = ssub.s32 %s12, %s19
    %p42 = scmp.eq.s32.totalorder %s41, 0
    %s44 = sadd.s32 %s43, 1
    %s45 = scalar_select %p42, %s43, %s44
    %p48 = pneg %p42
    %p49 = scmp.eq.s32.totalorder %s12, 1
    %p50 = por %p48, %p49
    %p51 = scmp.ne.s32.totalorder %s43, %s46
    %p52 = scmp.eq.s32.totalorder %s12, 0
    %p53 = por %p51, %p52
    %p54 = scmp.ne.s32.totalorder %s43, %s46
    %p55 = scmp.eq.s32.totalorder %s17, 1
    %p56 = por %p54, %p55
    %p57 = scmp.ne.s32.totalorder %s46, %s47
    %p58 = scmp.eq.s32.totalorder %s17, 0
    %p59 = por %p57, %p58
    %p60 = scmp.ne.s32.totalorder %s46, %s47
    %p61 = scmp.eq.s32.totalorder %s18, 1
    %p62 = por %p60, %p61
    %p64 = scmp.ne.s32.totalorder %s47, %s63
    %p65 = scmp.eq.s32.totalorder %s18, 0
    %p66 = por %p64, %p65
    %s68 = sadd.s32 %s67, 1
    %p71 = scmp.eq.s32.totalorder %s12, 1
    %p72 = scmp.ne.s32.totalorder %s67, %s69
    %p73 = scmp.eq.s32.totalorder %s12, 0
    %p74 = por %p72, %p73
    %p75 = scmp.ne.s32.totalorder %s67, %s69
    %p76 = scmp.eq.s32.totalorder %s17, 1
    %p77 = por %p75, %p76
    %p78 = scmp.ne.s32.totalorder %s69, %s70
    %p79 = scmp.eq.s32.totalorder %s17, 0
    %p80 = por %p78, %p79
    %p81 = scmp.ne.s32.totalorder %s69, %s70
    %p82 = scmp.eq.s32.totalorder %s18, 1
    %p83 = por %p81, %p82
    %p85 = scmp.ne.s32.totalorder %s70, %s84
    %p86 = scmp.eq.s32.totalorder %s18, 0
    %p87 = por %p85, %p86
    %s89 = sadd.s32 %s88, 1
    %p92 = scmp.eq.s32.totalorder %s12, 1
    %p93 = scmp.ne.s32.totalorder %s88, %s90
    %p94 = scmp.eq.s32.totalorder %s12, 0
    %p95 = por %p93, %p94
    %p96 = scmp.ne.s32.totalorder %s88, %s90
    %p97 = scmp.eq.s32.totalorder %s17, 1
    %p98 = por %p96, %p97
    %p99 = scmp.ne.s32.totalorder %s90, %s91
    %p100 = scmp.eq.s32.totalorder %s17, 0
    %p101 = por %p99, %p100
    %p102 = scmp.ne.s32.totalorder %s90, %s91
    %p103 = scmp.eq.s32.totalorder %s18, 1
    %p104 = por %p102, %p103
    %p106 = scmp.ne.s32.totalorder %s91, %s105
    %p107 = scmp.eq.s32.totalorder %s18, 0
    %p108 = por %p106, %p107
    %s110 = sadd.s32 %s109, 1
    %p113 = scmp.eq.s32.totalorder %s12, 1
    %p114 = scmp.ne.s32.totalorder %s109, %s111
    %p115 = scmp.eq.s32.totalorder %s12, 0
    %p116 = por %p114, %p115
    %p117 = scmp.ne.s32.totalorder %s109, %s111
    %p118 = scmp.eq.s32.totalorder %s17, 1
    %p119 = por %p117, %p118
    %p120 = scmp.ne.s32.totalorder %s111, %s112
    %p121 = scmp.eq.s32.totalorder %s17, 0
    %p122 = por %p120, %p121
    %p123 = scmp.ne.s32.totalorder %s111, %s112
    %p124 = scmp.eq.s32.totalorder %s18, 1
    %p125 = por %p123, %p124
    %p127 = scmp.ne.s32.totalorder %s112, %s126
    %p128 = scmp.eq.s32.totalorder %s18, 0
    %p129 = por %p127, %p128
    %s131 = sadd.s32 %s130, 1
    %p134 = scmp.eq.s32.totalorder %s12, 1
    %p135 = scmp.ne.s32.totalorder %s130, %s132
    %p136 = scmp.eq.s32.totalorder %s12, 0
    %p137 = por %p135, %p136
    %p138 = scmp.ne.s32.totalorder %s130, %s132
    %p139 = scmp.eq.s32.totalorder %s17, 1
    %p140 = por %p138, %p139
    %p141 = scmp.ne.s32.totalorder %s132, %s133
    %p142 = scmp.eq.s32.totalorder %s17, 0
    %p143 = por %p141, %p142
    %p144 = scmp.ne.s32.totalorder %s132, %s133
    %p145 = scmp.eq.s32.totalorder %s18, 1
    %p146 = por %p144, %p145
    %p148 = scmp.ne.s32.totalorder %s133, %s147
    %p149 = scmp.eq.s32.totalorder %s18, 0
    %p150 = por %p148, %p149
    %s151 = ssub.s32 %s12, %s19
    %p152 = scmp.eq.s32.totalorder %s151, 0
    %s154 = sadd.s32 %s153, 1
    %s155 = scalar_select %p152, %s153, %s154
    %p158 = pneg %p152
    %p159 = scmp.eq.s32.totalorder %s12, 1
    %p160 = por %p158, %p159
    %p161 = scmp.ne.s32.totalorder %s153, %s156
    %p162 = scmp.eq.s32.totalorder %s12, 0
    %p163 = por %p161, %p162
    %p164 = scmp.ne.s32.totalorder %s153, %s156
    %p165 = scmp.eq.s32.totalorder %s17, 1
    %p166 = por %p164, %p165
    %p167 = scmp.ne.s32.totalorder %s156, %s157
    %p168 = scmp.eq.s32.totalorder %s17, 0
    %p169 = por %p167, %p168
    %p170 = scmp.ne.s32.totalorder %s156, %s157
    %p171 = scmp.eq.s32.totalorder %s18, 1
    %p172 = por %p170, %p171
    %p174 = scmp.ne.s32.totalorder %s157, %s173
    %p175 = scmp.eq.s32.totalorder %s18, 0
    %p176 = por %p174, %p175
    %p177 = scmp.le.s32.totalorder 1, %s12
    %p178 = scmp.lt.s32.totalorder %s12, 3
    %p179 = pnand %p177, %p178
    %p180 = pneg %p179
    // Predicated region
    $region9: #{generator_forward.1} parent=5 // pred_check
      _
    $region10: #{generator_forward.1} parent=5 // pred_check_branch
      %182 = sbr.rel (%p179) target = $region12
    $region11: #{generator_forward.1} parent=5 // pred_region
      %s183 = ssub.s32 %s12, 1
      // Predicated region
      $region13: #{generator_forward.1} parent=11 // pred_check
        %p184 = pneg %p33
      $region14: #{generator_forward.1} parent=11 // pred_check_branch
        %186 = sbr.rel (%p184) target = $region16
      $region15: #{generator_forward.1} parent=11 // pred_region
        _
      $region16: #{generator_forward.1} parent=11 // pred_fallthru
        _
      // Predicated region
      $region17: #{generator_forward.1} parent=11 // pred_check
        %p187 = pneg %p80
      $region18: #{generator_forward.1} parent=11 // pred_check_branch
        %189 = sbr.rel (%p187) target = $region20
      $region19: #{generator_forward.1} parent=11 // pred_region
        _
      $region20: #{generator_forward.1} parent=11 // pred_fallthru
        _
      // Predicated region
      $region21: #{generator_forward.1} parent=11 // pred_check
        %p190 = pneg %p101
      $region22: #{generator_forward.1} parent=11 // pred_check_branch
        %192 = sbr.rel (%p190) target = $region24
      $region23: #{generator_forward.1} parent=11 // pred_region
        _
      $region24: #{generator_forward.1} parent=11 // pred_fallthru
        _
      // Predicated region
      $region25: #{generator_forward.1} parent=11 // pred_check
        %p193 = pneg %p122
      $region26: #{generator_forward.1} parent=11 // pred_check_branch
        %195 = sbr.rel (%p193) target = $region28
      $region27: #{generator_forward.1} parent=11 // pred_region
        _
      $region28: #{generator_forward.1} parent=11 // pred_fallthru
        _
      // Predicated region
      $region29: #{generator_forward.1} parent=11 // pred_check
        %p196 = pneg %p143
      $region30: #{generator_forward.1} parent=11 // pred_check_branch
        %198 = sbr.rel (%p196) target = $region32
      $region31: #{generator_forward.1} parent=11 // pred_region
        _
      $region32: #{generator_forward.1} parent=11 // pred_fallthru
        _
    $region12: #{generator_forward.1} parent=5 // pred_fallthru
      _
    %p199 = scmp.lt.s32.totalorder %s12, 2
    // Predicated region
    $region33: #{generator_forward.1} parent=5 // pred_check
      %p200 = pneg %p199
    $region34: #{generator_forward.1} parent=5 // pred_check_branch
      %202 = sbr.rel (%p200) target = $region36
    $region35: #{generator_forward.1} parent=5 // pred_region
      // Predicated region
      $region37: #{generator_forward.1} parent=35 // pred_check
        %p203 = pneg %p53
      $region38: #{generator_forward.1} parent=35 // pred_check_branch
        %205 = sbr.rel (%p203) target = $region40
      $region39: #{generator_forward.1} parent=35 // pred_region
        %p206 = scmp.lt.s32.totalorder %s12, 1
        %s207 = scalar_select %p206, %s12, 1
        %s208 = smul.addr %s207, 4
        %s209 = smul.addr %s208, 8
        %s210 = scalar_lea.vmem %s1, %s209
      $region40: #{generator_forward.1} parent=35 // pred_fallthru
        _
    $region36: #{generator_forward.1} parent=5 // pred_fallthru
      _
    %p211 = scmp.le.s32.totalorder 1, %s12
    %p212 = scmp.lt.s32.totalorder %s12, 3
    %p213 = pnand %p211, %p212
    %p214 = pneg %p213
    // Predicated region
    $region41: #{generator_forward.1} parent=5 // pred_check
      _
    $region42: #{generator_forward.1} parent=5 // pred_check_branch
      %216 = sbr.rel (%p213) target = $region44
    $region43: #{generator_forward.1} parent=5 // pred_region
      %s217 = ssub.s32 %s12, 1
      %p218 = pneg %p33
      %p219 = pneg %p30
      %p220 = scmp.lt.s32.totalorder %s17, 1
      %s221 = scalar_select %p220, %s17, 1
      %s222 = smul.addr %s221, 4
      %s223 = smul.addr %s222, 8
      %s224 = scalar_lea.vmem %s1, %s223
      %p225 = pneg %p59
      %p226 = pneg %p56
      %p227 = pneg %p80
      %p228 = pneg %p77
      %p229 = pneg %p101
      %p230 = pneg %p98
      %p231 = pneg %p122
      %p232 = pneg %p119
      %p233 = pneg %p143
      %p234 = pneg %p140
      %p235 = pneg %p169
      %p236 = pneg %p166
      %s237 = smul.u32 2, %s17
      %p238 = scmp.lt.s32.totalorder %s237, 3
      %s239 = scalar_select %p238, %s237, 3
      %s240 = smul.addr %s239, 2
      %s241 = smul.addr %s240, 4
      %s242 = scalar_lea.vmem %s6, %s241
      %p243 = scmp.lt.s32.totalorder %s17, 1
      %s244 = scalar_select %p243, %s17, 1
      %s245 = smul.addr %s244, 4
      %s246 = smul.addr %s245, 8
      %s247 = scalar_lea.vmem %s1, %s246
      %s248 = smul.u32 2, %s17
      %p249 = scmp.lt.s32.totalorder %s248, 3
      %s250 = scalar_select %p249, %s248, 3
      %s251 = smul.addr %s250, 2
      %s252 = smul.addr %s251, 4
      %s253 = scalar_lea.vmem %s6, %s252
      %s254 = smul.u32 2, %s17
      %v255 = vld [vmem:[%s247] sm:$0xff]
      %v256 = vld [vmem:[%s247 + $0x8] sm:$0xff]
      %v257 = vld [vmem:[%s247 + $0x10] sm:$0xff]
      %v258 = vld [vmem:[%s247 + $0x18] sm:$0xff]
      %259 = vrot.lane.b32.xlu0 %v255, 17
      %v260 = vpop.permute.xlu0 %259
      %261 = vrot.lane.b32.xlu0 %v256, 17
      %v262 = vpop.permute.xlu0 %261
      %263 = vrot.lane.b32.xlu0 %v257, 17
      %v264 = vpop.permute.xlu0 %263
      %265 = vrot.lane.b32.xlu0 %v258, 17
      %v266 = vpop.permute.xlu0 %265
      %v267 = vlaneseq
      %v268 = vand.u32 %v267, 127
      %vm269 = vcmp.lt.s32.totalorder %v268, 17
      %v270 = vsel %vm269, %v264, %v266
      %v271 = vsel %vm269, %v262, %v264
      %v272 = vsel %vm269, %v260, %v262
      %v273 = vsel %vm269, %v266, %v260
      %v274 = vld [vmem:[%s0] ss:$8 sm:$0xf]
      %v276 = vlaneseq
      %v277 = vshrl.u32 %v276, 7
      %v278 = vsub.s32 0, %v277
      %v279 = vrot.slane %v274, %v278
      %v280 = vlaneseq
      %v281 = vshrl.u32 %v280, 7
      %v282 = vsub.s32 1, %v281
      %v283 = vrot.slane %v274, %v282
      %v284 = vlaneseq
      %v285 = vshrl.u32 %v284, 7
      %v286 = vsub.s32 2, %v285
      %v287 = vrot.slane %v274, %v286
      %v288 = vlaneseq
      %v289 = vshrl.u32 %v288, 7
      %v290 = vsub.s32 3, %v289
      %v291 = vrot.slane %v274, %v290
      %v296 = vmul.f32 %v273, %v279
      %v297 = vmul.f32 %v272, %v283
      %v298 = vmul.f32 %v271, %v287
      %v299 = vmul.f32 %v270, %v291
      %300 = vrot.lane.b32.xlu0 %v255, 16
      %v301 = vpop.permute.xlu0 %300
      %302 = vrot.lane.b32.xlu0 %v256, 16
      %v303 = vpop.permute.xlu0 %302
      %304 = vrot.lane.b32.xlu0 %v257, 16
      %v305 = vpop.permute.xlu0 %304
      %306 = vrot.lane.b32.xlu0 %v258, 16
      %v307 = vpop.permute.xlu0 %306
      %vm308 = vcmp.lt.s32.totalorder %v268, 16
      %v309 = vsel %vm308, %v305, %v307
      %v310 = vsel %vm308, %v303, %v305
      %v311 = vsel %vm308, %v301, %v303
      %v312 = vsel %vm308, %v307, %v301
      %s313 = scalar_lea.vmem %s0, 1
      %v314 = vld [vmem:[%s313] ss:$8 sm:$0xf]
      %v316 = vlaneseq
      %v317 = vshrl.u32 %v316, 7
      %v318 = vsub.s32 0, %v317
      %v319 = vrot.slane %v314, %v318
      %v320 = vlaneseq
      %v321 = vshrl.u32 %v320, 7
      %v322 = vsub.s32 1, %v321
      %v323 = vrot.slane %v314, %v322
      %v324 = vlaneseq
      %v325 = vshrl.u32 %v324, 7
      %v326 = vsub.s32 2, %v325
      %v327 = vrot.slane %v314, %v326
      %v328 = vlaneseq
      %v329 = vshrl.u32 %v328, 7
      %v330 = vsub.s32 3, %v329
      %v331 = vrot.slane %v314, %v330
      %v336 = vmul.f32 %v312, %v319
      %v337 = vmul.f32 %v311, %v323
      %v338 = vmul.f32 %v310, %v327
      %v339 = vmul.f32 %v309, %v331
      %340 = vrot.lane.b32.xlu0 %v255, 15
      %v341 = vpop.permute.xlu0 %340
      %342 = vrot.lane.b32.xlu0 %v256, 15
      %v343 = vpop.permute.xlu0 %342
      %344 = vrot.lane.b32.xlu0 %v257, 15
      %v345 = vpop.permute.xlu0 %344
      %346 = vrot.lane.b32.xlu0 %v258, 15
      %v347 = vpop.permute.xlu0 %346
      %vm348 = vcmp.lt.s32.totalorder %v268, 15
      %v349 = vsel %vm348, %v345, %v347
      %v350 = vsel %vm348, %v343, %v345
      %v351 = vsel %vm348, %v341, %v343
      %v352 = vsel %vm348, %v347, %v341
      %s353 = scalar_lea.vmem %s0, 2
      %v354 = vld [vmem:[%s353] ss:$8 sm:$0xf]
      %v356 = vlaneseq
      %v357 = vshrl.u32 %v356, 7
      %v358 = vsub.s32 0, %v357
      %v359 = vrot.slane %v354, %v358
      %v360 = vlaneseq
      %v361 = vshrl.u32 %v360, 7
      %v362 = vsub.s32 1, %v361
      %v363 = vrot.slane %v354, %v362
      %v364 = vlaneseq
      %v365 = vshrl.u32 %v364, 7
      %v366 = vsub.s32 2, %v365
      %v367 = vrot.slane %v354, %v366
      %v368 = vlaneseq
      %v369 = vshrl.u32 %v368, 7
      %v370 = vsub.s32 3, %v369
      %v371 = vrot.slane %v354, %v370
      %v376 = vmul.f32 %v352, %v359
      %v377 = vmul.f32 %v351, %v363
      %v378 = vmul.f32 %v350, %v367
      %v379 = vmul.f32 %v349, %v371
      %380 = vrot.lane.b32.xlu0 %v255, 1
      %v381 = vpop.permute.xlu0 %380
      %382 = vrot.lane.b32.xlu0 %v256, 1
      %v383 = vpop.permute.xlu0 %382
      %384 = vrot.lane.b32.xlu0 %v257, 1
      %v385 = vpop.permute.xlu0 %384
      %386 = vrot.lane.b32.xlu0 %v258, 1
      %v387 = vpop.permute.xlu0 %386
      %vm388 = vcmp.lt.s32.totalorder %v268, 1
      %v389 = vsel %vm388, %v385, %v387
      %v390 = vsel %vm388, %v383, %v385
      %v391 = vsel %vm388, %v381, %v383
      %v392 = vsel %vm388, %v387, %v381
      %s393 = scalar_lea.vmem %s0, 3
      %v394 = vld [vmem:[%s393] ss:$8 sm:$0xf]
      %v396 = vlaneseq
      %v397 = vshrl.u32 %v396, 7
      %v398 = vsub.s32 0, %v397
      %v399 = vrot.slane %v394, %v398
      %v400 = vlaneseq
      %v401 = vshrl.u32 %v400, 7
      %v402 = vsub.s32 1, %v401
      %v403 = vrot.slane %v394, %v402
      %v404 = vlaneseq
      %v405 = vshrl.u32 %v404, 7
      %v406 = vsub.s32 2, %v405
      %v407 = vrot.slane %v394, %v406
      %v408 = vlaneseq
      %v409 = vshrl.u32 %v408, 7
      %v410 = vsub.s32 3, %v409
      %v411 = vrot.slane %v394, %v410
      %v416 = vmul.f32 %v392, %v399
      %v417 = vmul.f32 %v391, %v403
      %v418 = vmul.f32 %v390, %v407
      %v419 = vmul.f32 %v389, %v411
      %420 = vrot.lane.b32.xlu0 %v255, 127
      %v421 = vpop.permute.xlu0 %420
      %422 = vrot.lane.b32.xlu0 %v256, 127
      %v423 = vpop.permute.xlu0 %422
      %424 = vrot.lane.b32.xlu0 %v257, 127
      %v425 = vpop.permute.xlu0 %424
      %426 = vrot.lane.b32.xlu0 %v258, 127
      %v427 = vpop.permute.xlu0 %426
      %vm428 = vcmp.lt.s32.totalorder %v268, 127
      %v429 = vsel %vm428, %v425, %v427
      %v430 = vsel %vm428, %v423, %v425
      %v431 = vsel %vm428, %v421, %v423
      %v432 = vsel %vm428, %v427, %v421
      %s433 = scalar_lea.vmem %s0, 4
      %v434 = vld [vmem:[%s433] ss:$8 sm:$0xf]
      %v436 = vlaneseq
      %v437 = vshrl.u32 %v436, 7
      %v438 = vsub.s32 0, %v437
      %v439 = vrot.slane %v434, %v438
      %v440 = vlaneseq
      %v441 = vshrl.u32 %v440, 7
      %v442 = vsub.s32 1, %v441
      %v443 = vrot.slane %v434, %v442
      %v444 = vlaneseq
      %v445 = vshrl.u32 %v444, 7
      %v446 = vsub.s32 2, %v445
      %v447 = vrot.slane %v434, %v446
      %v448 = vlaneseq
      %v449 = vshrl.u32 %v448, 7
      %v450 = vsub.s32 3, %v449
      %v451 = vrot.slane %v434, %v450
      %v456 = vmul.f32 %v431, %v439
      %v457 = vmul.f32 %v430, %v443
      %v458 = vmul.f32 %v429, %v447
      %v459 = vmul.f32 %v432, %v451
      %460 = vrot.lane.b32.xlu0 %v255, 113
      %v461 = vpop.permute.xlu0 %460
      %462 = vrot.lane.b32.xlu0 %v256, 113
      %v463 = vpop.permute.xlu0 %462
      %464 = vrot.lane.b32.xlu0 %v257, 113
      %v465 = vpop.permute.xlu0 %464
      %466 = vrot.lane.b32.xlu0 %v258, 113
      %v467 = vpop.permute.xlu0 %466
      %vm468 = vcmp.lt.s32.totalorder %v268, 113
      %v469 = vsel %vm468, %v465, %v467
      %v470 = vsel %vm468, %v463, %v465
      %v471 = vsel %vm468, %v461, %v463
      %v472 = vsel %vm468, %v467, %v461
      %s473 = scalar_lea.vmem %s0, 5
      %v474 = vld [vmem:[%s473] ss:$8 sm:$0xf]
      %v476 = vlaneseq
      %v477 = vshrl.u32 %v476, 7
      %v478 = vsub.s32 0, %v477
      %v479 = vrot.slane %v474, %v478
      %v480 = vlaneseq
      %v481 = vshrl.u32 %v480, 7
      %v482 = vsub.s32 1, %v481
      %v483 = vrot.slane %v474, %v482
      %v484 = vlaneseq
      %v485 = vshrl.u32 %v484, 7
      %v486 = vsub.s32 2, %v485
      %v487 = vrot.slane %v474, %v486
      %v488 = vlaneseq
      %v489 = vshrl.u32 %v488, 7
      %v490 = vsub.s32 3, %v489
      %v491 = vrot.slane %v474, %v490
      %v496 = vmul.f32 %v471, %v479
      %v497 = vmul.f32 %v470, %v483
      %v498 = vmul.f32 %v469, %v487
      %v499 = vmul.f32 %v472, %v491
      %500 = vrot.lane.b32.xlu0 %v255, 112
      %v501 = vpop.permute.xlu0 %500
      %502 = vrot.lane.b32.xlu0 %v256, 112
      %v503 = vpop.permute.xlu0 %502
      %504 = vrot.lane.b32.xlu0 %v257, 112
      %v505 = vpop.permute.xlu0 %504
      %506 = vrot.lane.b32.xlu0 %v258, 112
      %v507 = vpop.permute.xlu0 %506
      %vm508 = vcmp.lt.s32.totalorder %v268, 112
      %v509 = vsel %vm508, %v505, %v507
      %v510 = vsel %vm508, %v503, %v505
      %v511 = vsel %vm508, %v501, %v503
      %v512 = vsel %vm508, %v507, %v501
      %s513 = scalar_lea.vmem %s0, 6
      %v514 = vld [vmem:[%s513] ss:$8 sm:$0xf]
      %v516 = vlaneseq
      %v517 = vshrl.u32 %v516, 7
      %v518 = vsub.s32 0, %v517
      %v519 = vrot.slane %v514, %v518
      %v520 = vlaneseq
      %v521 = vshrl.u32 %v520, 7
      %v522 = vsub.s32 1, %v521
      %v523 = vrot.slane %v514, %v522
      %v524 = vlaneseq
      %v525 = vshrl.u32 %v524, 7
      %v526 = vsub.s32 2, %v525
      %v527 = vrot.slane %v514, %v526
      %v528 = vlaneseq
      %v529 = vshrl.u32 %v528, 7
      %v530 = vsub.s32 3, %v529
      %v531 = vrot.slane %v514, %v530
      %v536 = vmul.f32 %v511, %v519
      %v537 = vmul.f32 %v510, %v523
      %v538 = vmul.f32 %v509, %v527
      %v539 = vmul.f32 %v512, %v531
      %540 = vrot.lane.b32.xlu0 %v255, 111
      %v541 = vpop.permute.xlu0 %540
      %542 = vrot.lane.b32.xlu0 %v256, 111
      %v543 = vpop.permute.xlu0 %542
      %544 = vrot.lane.b32.xlu0 %v257, 111
      %v545 = vpop.permute.xlu0 %544
      %546 = vrot.lane.b32.xlu0 %v258, 111
      %v547 = vpop.permute.xlu0 %546
      %vm548 = vcmp.lt.s32.totalorder %v268, 111
      %v549 = vsel %vm548, %v545, %v547
      %v550 = vsel %vm548, %v543, %v545
      %v551 = vsel %vm548, %v541, %v543
      %v552 = vsel %vm548, %v547, %v541
      %s553 = scalar_lea.vmem %s0, 7
      %v554 = vld [vmem:[%s553] ss:$8 sm:$0xf]
      %v556 = vlaneseq
      %v557 = vshrl.u32 %v556, 7
      %v558 = vsub.s32 0, %v557
      %v559 = vrot.slane %v554, %v558
      %v560 = vlaneseq
      %v561 = vshrl.u32 %v560, 7
      %v562 = vsub.s32 1, %v561
      %v563 = vrot.slane %v554, %v562
      %v564 = vlaneseq
      %v565 = vshrl.u32 %v564, 7
      %v566 = vsub.s32 2, %v565
      %v567 = vrot.slane %v554, %v566
      %v568 = vlaneseq
      %v569 = vshrl.u32 %v568, 7
      %v570 = vsub.s32 3, %v569
      %v571 = vrot.slane %v554, %v570
      %v576 = vmul.f32 %v551, %v559
      %v577 = vmul.f32 %v550, %v563
      %v578 = vmul.f32 %v549, %v567
      %v579 = vmul.f32 %v552, %v571
      %v580 = vld [vmem:[%s2] sm:$0xff]
      %v581 = vld [vmem:[%s2 + $0x8] sm:$0xff]
      %v582 = vld [vmem:[%s2 + $0x10] sm:$0xff]
      %v583 = vld [vmem:[%s2 + $0x18] sm:$0xff]
      %v584 = vld [vmem:[%s2 + $0x20] sm:$0xff]
      %v585 = vld [vmem:[%s2 + $0x28] sm:$0xff]
      %v586 = vld [vmem:[%s2 + $0x30] sm:$0xff]
      %v587 = vld [vmem:[%s2 + $0x38] sm:$0xff]
      %v588 = vld [vmem:[%s3] sm:$0xff]
      %v589 = vld [vmem:[%s3 + $0x8] sm:$0xff]
      %v590 = vld [vmem:[%s3 + $0x10] sm:$0xff]
      %v591 = vld [vmem:[%s3 + $0x18] sm:$0xff]
      %v592 = vld [vmem:[%s3 + $0x20] sm:$0xff]
      %v593 = vld [vmem:[%s3 + $0x28] sm:$0xff]
      %v594 = vld [vmem:[%s3 + $0x30] sm:$0xff]
      %v595 = vld [vmem:[%s3 + $0x38] sm:$0xff]
      %597 = vset.pattern.permute.xlu0 0
      %598 = vperm.xlu0 %597, %v588
      %v599 = vpop.permute.xlu0 %598
      %602 = vset.pattern.permute.xlu0 0
      %603 = vperm.xlu0 %602, %v589
      %v604 = vpop.permute.xlu0 %603
      %607 = vset.pattern.permute.xlu0 0
      %608 = vperm.xlu0 %607, %v590
      %v609 = vpop.permute.xlu0 %608
      %612 = vset.pattern.permute.xlu0 0
      %613 = vperm.xlu0 %612, %v591
      %v614 = vpop.permute.xlu0 %613
      %617 = vset.pattern.permute.xlu0 0
      %618 = vperm.xlu0 %617, %v592
      %v619 = vpop.permute.xlu0 %618
      %622 = vset.pattern.permute.xlu0 0
      %623 = vperm.xlu0 %622, %v593
      %v624 = vpop.permute.xlu0 %623
      %627 = vset.pattern.permute.xlu0 0
      %628 = vperm.xlu0 %627, %v594
      %v629 = vpop.permute.xlu0 %628
      %632 = vset.pattern.permute.xlu0 0
      %633 = vperm.xlu0 %632, %v595
      %v634 = vpop.permute.xlu0 %633
      %vm636 = vcmask 588800
      %v638 = vsel %vm636, %v580, 0
      %v641 = vsel %vm636, %v581, 0
      %v644 = vsel %vm636, %v582, 0
      %v647 = vsel %vm636, %v583, 0
      %v650 = vsel %vm636, %v584, 0
      %v653 = vsel %vm636, %v585, 0
      %v656 = vsel %vm636, %v586, 0
      %v659 = vsel %vm636, %v587, 0
      %661 = vmatprep.subr.mxu0 %v297
      %662 = vmatpush1.msra.mxu0 %v296
      %663 = vmatprep.subr.mxu0 %v337
      %664 = vmatpush1.msra.mxu0 %v336
      %665 = vmatprep.subr.mxu0 %v377
      %666 = vmatpush1.msra.mxu0 %v376
      %667 = vmatprep.subr.mxu0 %v417
      %668 = vmatpush1.msra.mxu0 %v416
      %669 = vmatprep.subr.mxu0 %v256
      %670 = vmatpush1.msra.mxu0 %v255
      %671 = vmatprep.subr.mxu0 %v457
      %672 = vmatpush1.msra.mxu0 %v456
      %673 = vmatprep.subr.mxu0 %v497
      %674 = vmatpush1.msra.mxu0 %v496
      %675 = vmatprep.subr.mxu0 %v537
      %676 = vmatpush1.msra.mxu0 %v536
      %677 = vmatprep.subr.mxu0 %v577
      %678 = vmatpush1.msra.mxu0 %v576
      %679 = vmatprep.subr.mxu0 0.0
      %680 = vmatpush1.msra.mxu0 0.0
      %681 = vmatprep.subr.mxu0 0.0
      %682 = vmatpush1.msra.mxu0 0.0
      %683 = vmatprep.subr.mxu0 0.0
      %684 = vmatpush1.msra.mxu0 0.0
      %685 = vmatprep.subr.mxu0 0.0
      %686 = vmatpush1.msra.mxu0 0.0
      %687 = vmatprep.subr.mxu0 0.0
      %688 = vmatpush1.msra.mxu0 0.0
      %689 = vmatprep.subr.mxu0 0.0
      %690 = vmatpush1.msra.mxu0 0.0
      %691 = vmatprep.subr.mxu0 0.0
      %692 = vmatpush1.msra.mxu0 0.0
      %693 = vmatprep.subr.mxu0 0.0
      %694 = vmatpush1.msra.mxu0 0.0
      %695 = vmatprep.subr.mxu0 0.0
      %696 = vmatpush1.msra.mxu0 0.0
      %697 = vmatprep.subr.mxu0 0.0
      %698 = vmatpush1.msra.mxu0 0.0
      %699 = vmatprep.subr.mxu0 0.0
      %700 = vmatpush1.msra.mxu0 0.0
      %701 = vmatprep.subr.mxu0 0.0
      %702 = vmatpush1.msra.mxu0 0.0
      %703 = vmatprep.subr.mxu0 0.0
      %704 = vmatpush1.msra.mxu0 0.0
      %705 = vmatprep.subr.mxu0 0.0
      %706 = vmatpush1.msra.mxu0 0.0
      %707 = vmatprep.subr.mxu0 0.0
      %708 = vmatpush1.msra.mxu0 0.0
      %709 = vmatprep.subr.mxu0 0.0
      %710 = vmatpush1.msra.mxu0 0.0
      %711 = vmatprep.subr.mxu0 0.0
      %712 = vmatpush1.msra.mxu0 0.0
      %713 = vmatprep.subr.mxu0 0.0
      %714 = vmatpush1.msra.mxu0 0.0
      %715 = vmatprep.subr.mxu0 0.0
      %716 = vmatpush1.msra.mxu0 0.0
      %717 = vmatprep.subr.mxu0 0.0
      %718 = vmatpush1.msra.mxu0 0.0
      %719 = vmatprep.subr.mxu0 0.0
      %720 = vmatpush1.msra.mxu0 0.0
      %721 = vmatprep.subr.mxu0 0.0
      %722 = vmatpush1.msra.mxu0 0.0
      %723 = vmatprep.subr.mxu0 0.0
      %724 = vmatpush1.msra.mxu0 0.0
      %725 = vmatprep.mubr.f32.mxu0 0.0
      %726 = vmatmul.mubr.f32.gmra.mrb[0].mxu0 %v638
      %v727 = vpop.f32.mrb[0].mxu0
      %v728 = vadd.f32 %v599, %v727
      %v729 = vpop.f32.mrb[0].mxu0
      %v730 = vadd.f32 %v599, %v729
      %731 = vmatprep.mubr.f32.mxu0 0.0
      %732 = vmatmul.mubr.f32.gmra.mrb[0].mxu0 %v641
      %v733 = vpop.f32.mrb[0].mxu0
      %v734 = vadd.f32 %v604, %v733
      %v735 = vpop.f32.mrb[0].mxu0
      %v736 = vadd.f32 %v604, %v735
      %737 = vmatprep.mubr.f32.mxu0 0.0
      %738 = vmatmul.mubr.f32.gmra.mrb[0].mxu0 %v644
      %v739 = vpop.f32.mrb[0].mxu0
      %v740 = vadd.f32 %v609, %v739
      %v741 = vpop.f32.mrb[0].mxu0
      %v742 = vadd.f32 %v609, %v741
      %743 = vmatprep.mubr.f32.mxu0 0.0
      %744 = vmatmul.mubr.f32.gmra.mrb[0].mxu0 %v647
      %v745 = vpop.f32.mrb[0].mxu0
      %v746 = vadd.f32 %v614, %v745
      %v747 = vpop.f32.mrb[0].mxu0
      %v748 = vadd.f32 %v614, %v747
      %749 = vmatprep.mubr.f32.mxu0 0.0
      %750 = vmatmul.mubr.f32.gmra.mrb[0].mxu0 %v650
      %v751 = vpop.f32.mrb[0].mxu0
      %v752 = vadd.f32 %v619, %v751
      %v753 = vpop.f32.mrb[0].mxu0
      %v754 = vadd.f32 %v619, %v753
      %755 = vmatprep.mubr.f32.mxu0 0.0
      %756 = vmatmul.mubr.f32.gmra.mrb[0].mxu0 %v653
      %v757 = vpop.f32.mrb[0].mxu0
      %v758 = vadd.f32 %v624, %v757
      %v759 = vpop.f32.mrb[0].mxu0
      %v760 = vadd.f32 %v624, %v759
      %761 = vmatprep.mubr.f32.mxu0 0.0
      %762 = vmatmul.mubr.f32.gmra.mrb[0].mxu0 %v656
      %v763 = vpop.f32.mrb[0].mxu0
      %v764 = vadd.f32 %v629, %v763
      %v765 = vpop.f32.mrb[0].mxu0
      %v766 = vadd.f32 %v629, %v765
      %767 = vmatprep.mubr.f32.mxu0 0.0
      %768 = vmatmul.mubr.f32.gmra.mrb[0].mxu0 %v659
      %v769 = vpop.f32.mrb[0].mxu0
      %v770 = vadd.f32 %v634, %v769
      %v771 = vpop.f32.mrb[0].mxu0
      %v772 = vadd.f32 %v634, %v771
      %773 = vdwg.mxu0
      %774 = vmatprep.subr.mxu0 %v299
      %775 = vmatpush1.msra.mxu0 %v298
      %776 = vmatprep.subr.mxu0 %v339
      %777 = vmatpush1.msra.mxu0 %v338
      %778 = vmatprep.subr.mxu0 %v379
      %779 = vmatpush1.msra.mxu0 %v378
      %780 = vmatprep.subr.mxu0 %v419
      %781 = vmatpush1.msra.mxu0 %v418
      %782 = vmatprep.subr.mxu0 %v258
      %783 = vmatpush1.msra.mxu0 %v257
      %784 = vmatprep.subr.mxu0 %v459
      %785 = vmatpush1.msra.mxu0 %v458
      %786 = vmatprep.subr.mxu0 %v499
      %787 = vmatpush1.msra.mxu0 %v498
      %788 = vmatprep.subr.mxu0 %v539
      %789 = vmatpush1.msra.mxu0 %v538
      %790 = vmatprep.subr.mxu0 %v579
      %791 = vmatpush1.msra.mxu0 %v578
      %792 = vmatprep.subr.mxu0 0.0
      %793 = vmatpush1.msra.mxu0 0.0
      %794 = vmatprep.subr.mxu0 0.0
      %795 = vmatpush1.msra.mxu0 0.0
      %796 = vmatprep.subr.mxu0 0.0
      %797 = vmatpush1.msra.mxu0 0.0
      %798 = vmatprep.subr.mxu0 0.0
      %799 = vmatpush1.msra.mxu0 0.0
      %800 = vmatprep.subr.mxu0 0.0
      %801 = vmatpush1.msra.mxu0 0.0
      %802 = vmatprep.subr.mxu0 0.0
      %803 = vmatpush1.msra.mxu0 0.0
      %804 = vmatprep.subr.mxu0 0.0
      %805 = vmatpush1.msra.mxu0 0.0
      %806 = vmatprep.subr.mxu0 0.0
      %807 = vmatpush1.msra.mxu0 0.0
      %808 = vmatprep.subr.mxu0 0.0
      %809 = vmatpush1.msra.mxu0 0.0
      %810 = vmatprep.subr.mxu0 0.0
      %811 = vmatpush1.msra.mxu0 0.0
      %812 = vmatprep.subr.mxu0 0.0
      %813 = vmatpush1.msra.mxu0 0.0
      %814 = vmatprep.subr.mxu0 0.0
      %815 = vmatpush1.msra.mxu0 0.0
      %816 = vmatprep.subr.mxu0 0.0
      %817 = vmatpush1.msra.mxu0 0.0
      %818 = vmatprep.subr.mxu0 0.0
      %819 = vmatpush1.msra.mxu0 0.0
      %820 = vmatprep.subr.mxu0 0.0
      %821 = vmatpush1.msra.mxu0 0.0
      %822 = vmatprep.subr.mxu0 0.0
      %823 = vmatpush1.msra.mxu0 0.0
      %824 = vmatprep.subr.mxu0 0.0
      %825 = vmatpush1.msra.mxu0 0.0
      %826 = vmatprep.subr.mxu0 0.0
      %827 = vmatpush1.msra.mxu0 0.0
      %828 = vmatprep.subr.mxu0 0.0
      %829 = vmatpush1.msra.mxu0 0.0
      %830 = vmatprep.subr.mxu0 0.0
      %831 = vmatpush1.msra.mxu0 0.0
      %832 = vmatprep.subr.mxu0 0.0
      %833 = vmatpush1.msra.mxu0 0.0
      %834 = vmatprep.subr.mxu0 0.0
      %835 = vmatpush1.msra.mxu0 0.0
      %836 = vmatprep.subr.mxu0 0.0
      %837 = vmatpush1.msra.mxu0 0.0
      %838 = vmatprep.mubr.f32.mxu0 0.0
      %839 = vmatmul.mubr.f32.gmra.mrb[0].mxu0 %v638
      %v840 = vpop.f32.mrb[0].mxu0
      %v841 = vadd.f32 %v599, %v840
      %v842 = vpop.f32.mrb[0].mxu0
      %v843 = vadd.f32 %v599, %v842
      %844 = vmatprep.mubr.f32.mxu0 0.0
      %845 = vmatmul.mubr.f32.gmra.mrb[0].mxu0 %v641
      %v846 = vpop.f32.mrb[0].mxu0
      %v847 = vadd.f32 %v604, %v846
      %v848 = vpop.f32.mrb[0].mxu0
      %v849 = vadd.f32 %v604, %v848
      %850 = vmatprep.mubr.f32.mxu0 0.0
      %851 = vmatmul.mubr.f32.gmra.mrb[0].mxu0 %v644
      %v852 = vpop.f32.mrb[0].mxu0
      %v853 = vadd.f32 %v609, %v852
      %v854 = vpop.f32.mrb[0].mxu0
      %v855 = vadd.f32 %v609, %v854
      %856 = vmatprep.mubr.f32.mxu0 0.0
      %857 = vmatmul.mubr.f32.gmra.mrb[0].mxu0 %v647
      %v858 = vpop.f32.mrb[0].mxu0
      %v859 = vadd.f32 %v614, %v858
      %v860 = vpop.f32.mrb[0].mxu0
      %v861 = vadd.f32 %v614, %v860
      %862 = vmatprep.mubr.f32.mxu0 0.0
      %863 = vmatmul.mubr.f32.gmra.mrb[0].mxu0 %v650
      %v864 = vpop.f32.mrb[0].mxu0
      %v865 = vadd.f32 %v619, %v864
      %v866 = vpop.f32.mrb[0].mxu0
      %v867 = vadd.f32 %v619, %v866
      %868 = vmatprep.mubr.f32.mxu0 0.0
      %869 = vmatmul.mubr.f32.gmra.mrb[0].mxu0 %v653
      %v870 = vpop.f32.mrb[0].mxu0
      %v871 = vadd.f32 %v624, %v870
      %v872 = vpop.f32.mrb[0].mxu0
      %v873 = vadd.f32 %v624, %v872
      %874 = vmatprep.mubr.f32.mxu0 0.0
      %875 = vmatmul.mubr.f32.gmra.mrb[0].mxu0 %v656
      %v876 = vpop.f32.mrb[0].mxu0
      %v877 = vadd.f32 %v629, %v876
      %v878 = vpop.f32.mrb[0].mxu0
      %v879 = vadd.f32 %v629, %v878
      %880 = vmatprep.mubr.f32.mxu0 0.0
      %881 = vmatmul.mubr.f32.gmra.mrb[0].mxu0 %v659
      %v882 = vpop.f32.mrb[0].mxu0
      %v883 = vadd.f32 %v634, %v882
      %v884 = vpop.f32.mrb[0].mxu0
      %v885 = vadd.f32 %v634, %v884
      %886 = vdwg.mxu0
      %v887 = vmax.f32 %v728, 0.0
      %v888 = vmax.f32 %v730, 0.0
      %v889 = vmax.f32 %v841, 0.0
      %v890 = vmax.f32 %v843, 0.0
      %v891 = vmax.f32 %v734, 0.0
      %v892 = vmax.f32 %v736, 0.0
      %v893 = vmax.f32 %v847, 0.0
      %v894 = vmax.f32 %v849, 0.0
      %v895 = vmax.f32 %v740, 0.0
      %v896 = vmax.f32 %v742, 0.0
      %v897 = vmax.f32 %v853, 0.0
      %v898 = vmax.f32 %v855, 0.0
      %v899 = vmax.f32 %v746, 0.0
      %v900 = vmax.f32 %v748, 0.0
      %v901 = vmax.f32 %v859, 0.0
      %v902 = vmax.f32 %v861, 0.0
      %v903 = vmax.f32 %v752, 0.0
      %v904 = vmax.f32 %v754, 0.0
      %v905 = vmax.f32 %v865, 0.0
      %v906 = vmax.f32 %v867, 0.0
      %v907 = vmax.f32 %v758, 0.0
      %v908 = vmax.f32 %v760, 0.0
      %v909 = vmax.f32 %v871, 0.0
      %v910 = vmax.f32 %v873, 0.0
      %v911 = vmax.f32 %v764, 0.0
      %v912 = vmax.f32 %v766, 0.0
      %v913 = vmax.f32 %v877, 0.0
      %v914 = vmax.f32 %v879, 0.0
      %v915 = vmax.f32 %v770, 0.0
      %v916 = vmax.f32 %v772, 0.0
      %v917 = vmax.f32 %v883, 0.0
      %v918 = vmax.f32 %v885, 0.0
      %v919 = vld [vmem:[%s4] sm:$0xff]
      %v920 = vld [vmem:[%s4 + $0x8] sm:$0xff]
      %v921 = vld [vmem:[%s4 + $0x10] sm:$0xff]
      %v922 = vld [vmem:[%s4 + $0x18] sm:$0x7]
      %vm923 = vcmask 523264
      %v925 = vsel %vm923, %v919, 0
      %v928 = vsel %vm923, %v920, 0
      %v931 = vsel %vm923, %v921, 0
      %v934 = vsel %vm923, %v922, 0
      %936 = vmatprep.subr.mxu0 %v888
      %937 = vmatpush1.msra.mxu0 %v887
      %938 = vmatprep.subr.mxu0 %v892
      %939 = vmatpush1.msra.mxu0 %v891
      %940 = vmatprep.subr.mxu0 %v896
      %941 = vmatpush1.msra.mxu0 %v895
      %942 = vmatprep.subr.mxu0 %v900
      %943 = vmatpush1.msra.mxu0 %v899
      %944 = vmatprep.subr.mxu0 %v904
      %945 = vmatpush1.msra.mxu0 %v903
      %946 = vmatprep.subr.mxu0 %v908
      %947 = vmatpush1.msra.mxu0 %v907
      %948 = vmatprep.subr.mxu0 %v912
      %949 = vmatpush1.msra.mxu0 %v911
      %950 = vmatprep.subr.mxu0 %v916
      %951 = vmatpush1.msra.mxu0 %v915
      %952 = vmatprep.subr.mxu0 0.0
      %953 = vmatpush1.msra.mxu0 0.0
      %954 = vmatprep.subr.mxu0 0.0
      %955 = vmatpush1.msra.mxu0 0.0
      %956 = vmatprep.subr.mxu0 0.0
      %957 = vmatpush1.msra.mxu0 0.0
      %958 = vmatprep.subr.mxu0 0.0
      %959 = vmatpush1.msra.mxu0 0.0
      %960 = vmatprep.subr.mxu0 0.0
      %961 = vmatpush1.msra.mxu0 0.0
      %962 = vmatprep.subr.mxu0 0.0
      %963 = vmatpush1.msra.mxu0 0.0
      %964 = vmatprep.subr.mxu0 0.0
      %965 = vmatpush1.msra.mxu0 0.0
      %966 = vmatprep.subr.mxu0 0.0
      %967 = vmatpush1.msra.mxu0 0.0
      %968 = vmatprep.subr.mxu0 0.0
      %969 = vmatpush1.msra.mxu0 0.0
      %970 = vmatprep.subr.mxu0 0.0
      %971 = vmatpush1.msra.mxu0 0.0
      %972 = vmatprep.subr.mxu0 0.0
      %973 = vmatpush1.msra.mxu0 0.0
      %974 = vmatprep.subr.mxu0 0.0
      %975 = vmatpush1.msra.mxu0 0.0
      %976 = vmatprep.subr.mxu0 0.0
      %977 = vmatpush1.msra.mxu0 0.0
      %978 = vmatprep.subr.mxu0 0.0
      %979 = vmatpush1.msra.mxu0 0.0
      %980 = vmatprep.subr.mxu0 0.0
      %981 = vmatpush1.msra.mxu0 0.0
      %982 = vmatprep.subr.mxu0 0.0
      %983 = vmatpush1.msra.mxu0 0.0
      %984 = vmatprep.subr.mxu0 0.0
      %985 = vmatpush1.msra.mxu0 0.0
      %986 = vmatprep.subr.mxu0 0.0
      %987 = vmatpush1.msra.mxu0 0.0
      %988 = vmatprep.subr.mxu0 0.0
      %989 = vmatpush1.msra.mxu0 0.0
      %990 = vmatprep.subr.mxu0 0.0
      %991 = vmatpush1.msra.mxu0 0.0
      %992 = vmatprep.subr.mxu0 0.0
      %993 = vmatpush1.msra.mxu0 0.0
      %994 = vmatprep.subr.mxu0 0.0
      %995 = vmatpush1.msra.mxu0 0.0
      %996 = vmatprep.subr.mxu0 0.0
      %997 = vmatpush1.msra.mxu0 0.0
      %998 = vmatprep.subr.mxu0 0.0
      %999 = vmatpush1.msra.mxu0 0.0
      %1000 = vmatprep.mubr.f32.mxu0 0.0
      %1001 = vmatmul.mubr.f32.gmra.mrb[0].mxu0 %v925
      %v1002 = vpop.f32.mrb[0].mxu0
      %v1003 = vadd.f32 0.0, %v1002
      %v1004 = vpop.f32.mrb[0].mxu0
      %v1005 = vadd.f32 0.0, %v1004
      %1006 = vmatprep.mubr.f32.mxu0 0.0
      %1007 = vmatmul.mubr.f32.gmra.mrb[0].mxu0 %v928
      %v1008 = vpop.f32.mrb[0].mxu0
      %v1009 = vadd.f32 0.0, %v1008
      %v1010 = vpop.f32.mrb[0].mxu0
      %v1011 = vadd.f32 0.0, %v1010
      %1012 = vmatprep.mubr.f32.mxu0 0.0
      %1013 = vmatmul.mubr.f32.gmra.mrb[0].mxu0 %v931
      %v1014 = vpop.f32.mrb[0].mxu0
      %v1015 = vadd.f32 0.0, %v1014
      %v1016 = vpop.f32.mrb[0].mxu0
      %v1017 = vadd.f32 0.0, %v1016
      %1018 = vmatprep.mubr.f32.mxu0 0.0
      %1019 = vmatmul.mubr.f32.gmra.mrb[0].mxu0 %v934
      %v1020 = vpop.f32.mrb[0].mxu0
      %v1021 = vadd.f32 0.0, %v1020
      %v1022 = vpop.f32.mrb[0].mxu0
      %v1023 = vadd.f32 0.0, %v1022
      %1024 = vdwg.mxu0
      %1025 = vmatprep.subr.mxu0 %v890
      %1026 = vmatpush1.msra.mxu0 %v889
      %1027 = vmatprep.subr.mxu0 %v894
      %1028 = vmatpush1.msra.mxu0 %v893
      %1029 = vmatprep.subr.mxu0 %v898
      %1030 = vmatpush1.msra.mxu0 %v897
      %1031 = vmatprep.subr.mxu0 %v902
      %1032 = vmatpush1.msra.mxu0 %v901
      %1033 = vmatprep.subr.mxu0 %v906
      %1034 = vmatpush1.msra.mxu0 %v905
      %1035 = vmatprep.subr.mxu0 %v910
      %1036 = vmatpush1.msra.mxu0 %v909
      %1037 = vmatprep.subr.mxu0 %v914
      %1038 = vmatpush1.msra.mxu0 %v913
      %1039 = vmatprep.subr.mxu0 %v918
      %1040 = vmatpush1.msra.mxu0 %v917
      %1041 = vmatprep.subr.mxu0 0.0
      %1042 = vmatpush1.msra.mxu0 0.0
      %1043 = vmatprep.subr.mxu0 0.0
      %1044 = vmatpush1.msra.mxu0 0.0
      %1045 = vmatprep.subr.mxu0 0.0
      %1046 = vmatpush1.msra.mxu0 0.0
      %1047 = vmatprep.subr.mxu0 0.0
      %1048 = vmatpush1.msra.mxu0 0.0
      %1049 = vmatprep.subr.mxu0 0.0
      %1050 = vmatpush1.msra.mxu0 0.0
      %1051 = vmatprep.subr.mxu0 0.0
      %1052 = vmatpush1.msra.mxu0 0.0
      %1053 = vmatprep.subr.mxu0 0.0
      %1054 = vmatpush1.msra.mxu0 0.0
      %1055 = vmatprep.subr.mxu0 0.0
      %1056 = vmatpush1.msra.mxu0 0.0
      %1057 = vmatprep.subr.mxu0 0.0
      %1058 = vmatpush1.msra.mxu0 0.0
      %1059 = vmatprep.subr.mxu0 0.0
      %1060 = vmatpush1.msra.mxu0 0.0
      %1061 = vmatprep.subr.mxu0 0.0
      %1062 = vmatpush1.msra.mxu0 0.0
      %1063 = vmatprep.subr.mxu0 0.0
      %1064 = vmatpush1.msra.mxu0 0.0
      %1065 = vmatprep.subr.mxu0 0.0
      %1066 = vmatpush1.msra.mxu0 0.0
      %1067 = vmatprep.subr.mxu0 0.0
      %1068 = vmatpush1.msra.mxu0 0.0
      %1069 = vmatprep.subr.mxu0 0.0
      %1070 = vmatpush1.msra.mxu0 0.0
      %1071 = vmatprep.subr.mxu0 0.0
      %1072 = vmatpush1.msra.mxu0 0.0
      %1073 = vmatprep.subr.mxu0 0.0
      %1074 = vmatpush1.msra.mxu0 0.0
      %1075 = vmatprep.subr.mxu0 0.0
      %1076 = vmatpush1.msra.mxu0 0.0
      %1077 = vmatprep.subr.mxu0 0.0
      %1078 = vmatpush1.msra.mxu0 0.0
      %1079 = vmatprep.subr.mxu0 0.0
      %1080 = vmatpush1.msra.mxu0 0.0
      %1081 = vmatprep.subr.mxu0 0.0
      %1082 = vmatpush1.msra.mxu0 0.0
      %1083 = vmatprep.subr.mxu0 0.0
      %1084 = vmatpush1.msra.mxu0 0.0
      %1085 = vmatprep.subr.mxu0 0.0
      %1086 = vmatpush1.msra.mxu0 0.0
      %1087 = vmatprep.subr.mxu0 0.0
      %1088 = vmatpush1.msra.mxu0 0.0
      %1089 = vmatprep.mubr.f32.mxu0 0.0
      %1090 = vmatmul.mubr.f32.gmra.mrb[0].mxu0 %v925
      %v1091 = vpop.f32.mrb[0].mxu0
      %v1092 = vadd.f32 0.0, %v1091
      %v1093 = vpop.f32.mrb[0].mxu0
      %v1094 = vadd.f32 0.0, %v1093
      %1095 = vmatprep.mubr.f32.mxu0 0.0
      %1096 = vmatmul.mubr.f32.gmra.mrb[0].mxu0 %v928
      %v1097 = vpop.f32.mrb[0].mxu0
      %v1098 = vadd.f32 0.0, %v1097
      %v1099 = vpop.f32.mrb[0].mxu0
      %v1100 = vadd.f32 0.0, %v1099
      %1101 = vmatprep.mubr.f32.mxu0 0.0
      %1102 = vmatmul.mubr.f32.gmra.mrb[0].mxu0 %v931
      %v1103 = vpop.f32.mrb[0].mxu0
      %v1104 = vadd.f32 0.0, %v1103
      %v1105 = vpop.f32.mrb[0].mxu0
      %v1106 = vadd.f32 0.0, %v1105
      %1107 = vmatprep.mubr.f32.mxu0 0.0
      %1108 = vmatmul.mubr.f32.gmra.mrb[0].mxu0 %v934
      %v1109 = vpop.f32.mrb[0].mxu0
      %v1110 = vadd.f32 0.0, %v1109
      %v1111 = vpop.f32.mrb[0].mxu0
      %v1112 = vadd.f32 0.0, %v1111
      %1113 = vdwg.mxu0
      %v1114 = vld [vmem:[%s5] sm:$0x7]
      %1116 = vset.pattern.permute.xlu0 0
      %1117 = vperm.xlu0 %1116, %v1114
      %v1118 = vpop.permute.xlu0 %1117
      %v1119 = vrot.slane %v1118, 4
      %v1121 = vadd.f32 %v1009, %v1119
      %v1122 = vadd.f32 %v1011, %v1119
      %v1123 = vadd.f32 %v1098, %v1119
      %v1124 = vadd.f32 %v1100, %v1119
      %1125 = vrot.lane.b32.xlu0 %v1003, 17
      %v1126 = vpop.permute.xlu0 %1125
      %1127 = vrot.lane.b32.xlu0 %v1005, 17
      %v1128 = vpop.permute.xlu0 %1127
      %1129 = vrot.lane.b32.xlu0 %v1092, 17
      %v1130 = vpop.permute.xlu0 %1129
      %1131 = vrot.lane.b32.xlu0 %v1094, 17
      %v1132 = vpop.permute.xlu0 %1131
      %v1133 = vsel %vm269, %v1130, %v1132
      %v1134 = vsel %vm269, %v1128, %v1130
      %v1135 = vsel %vm269, %v1126, %v1128
      %v1136 = vsel %vm269, %v1132, %v1126
      %v1137 = vmul.f32 %v1136, %v279
      %v1138 = vmul.f32 %v1135, %v283
      %v1139 = vmul.f32 %v1134, %v287
      %v1140 = vmul.f32 %v1133, %v291
      %v1145 = vrot.slane %v1137, 4
      %v1146 = vrot.slane %v1138, 4
      %v1147 = vrot.slane %v1139, 4
      %v1148 = vrot.slane %v1140, 4
      %v1153 = vadd.f32 %v1121, %v1145
      %v1154 = vadd.f32 %v1122, %v1146
      %v1155 = vadd.f32 %v1123, %v1147
      %v1156 = vadd.f32 %v1124, %v1148
      %v1161 = vrot.slane %v1003, 3
      %v1162 = vrot.slane %v1005, 3
      %v1163 = vrot.slane %v1092, 3
      %v1164 = vrot.slane %v1094, 3
      %1169 = vrot.lane.b32.xlu0 %v1161, 16
      %v1170 = vpop.permute.xlu0 %1169
      %1171 = vrot.lane.b32.xlu0 %v1162, 16
      %v1172 = vpop.permute.xlu0 %1171
      %1173 = vrot.lane.b32.xlu0 %v1163, 16
      %v1174 = vpop.permute.xlu0 %1173
      %1175 = vrot.lane.b32.xlu0 %v1164, 16
      %v1176 = vpop.permute.xlu0 %1175
      %v1177 = vsel %vm308, %v1174, %v1176
      %v1178 = vsel %vm308, %v1172, %v1174
      %v1179 = vsel %vm308, %v1170, %v1172
      %v1180 = vsel %vm308, %v1176, %v1170
      %v1181 = vmul.f32 %v1180, %v319
      %v1182 = vmul.f32 %v1179, %v323
      %v1183 = vmul.f32 %v1178, %v327
      %v1184 = vmul.f32 %v1177, %v331
      %v1189 = vrot.slane %v1181, 4
      %v1190 = vrot.slane %v1182, 4
      %v1191 = vrot.slane %v1183, 4
      %v1192 = vrot.slane %v1184, 4
      %v1197 = vadd.f32 %v1153, %v1189
      %v1198 = vadd.f32 %v1154, %v1190
      %v1199 = vadd.f32 %v1155, %v1191
      %v1200 = vadd.f32 %v1156, %v1192
      %vm1205 = vcmask 1041408
      %v1206 = vrot.slane %v1003, 6
      %v1207 = vrot.slane %v1009, 6
      %v1208 = vsel %vm1205, %v1206, %v1207
      %v1209 = vrot.slane %v1005, 6
      %v1210 = vrot.slane %v1011, 6
      %v1211 = vsel %vm1205, %v1209, %v1210
      %v1212 = vrot.slane %v1092, 6
      %v1213 = vrot.slane %v1098, 6
      %v1214 = vsel %vm1205, %v1212, %v1213
      %v1215 = vrot.slane %v1094, 6
      %v1216 = vrot.slane %v1100, 6
      %v1217 = vsel %vm1205, %v1215, %v1216
      %1222 = vrot.lane.b32.xlu0 %v1208, 15
      %v1223 = vpop.permute.xlu0 %1222
      %1224 = vrot.lane.b32.xlu0 %v1211, 15
      %v1225 = vpop.permute.xlu0 %1224
      %1226 = vrot.lane.b32.xlu0 %v1214, 15
      %v1227 = vpop.permute.xlu0 %1226
      %1228 = vrot.lane.b32.xlu0 %v1217, 15
      %v1229 = vpop.permute.xlu0 %1228
      %v1230 = vsel %vm348, %v1227, %v1229
      %v1231 = vsel %vm348, %v1225, %v1227
      %v1232 = vsel %vm348, %v1223, %v1225
      %v1233 = vsel %vm348, %v1229, %v1223
      %v1234 = vmul.f32 %v1233, %v359
      %v1235 = vmul.f32 %v1232, %v363
      %v1236 = vmul.f32 %v1231, %v367
      %v1237 = vmul.f32 %v1230, %v371
      %v1242 = vrot.slane %v1234, 4
      %v1243 = vrot.slane %v1235, 4
      %v1244 = vrot.slane %v1236, 4
      %v1245 = vrot.slane %v1237, 4
      %v1250 = vadd.f32 %v1197, %v1242
      %v1251 = vadd.f32 %v1198, %v1243
      %v1252 = vadd.f32 %v1199, %v1244
      %v1253 = vadd.f32 %v1200, %v1245
      %v1254 = vrot.slane %v1009, 1
      %v1255 = vrot.slane %v1011, 1
      %v1256 = vrot.slane %v1098, 1
      %v1257 = vrot.slane %v1100, 1
      %1262 = vrot.lane.b32.xlu0 %v1254, 1
      %v1263 = vpop.permute.xlu0 %1262
      %1264 = vrot.lane.b32.xlu0 %v1255, 1
      %v1265 = vpop.permute.xlu0 %1264
      %1266 = vrot.lane.b32.xlu0 %v1256, 1
      %v1267 = vpop.permute.xlu0 %1266
      %1268 = vrot.lane.b32.xlu0 %v1257, 1
      %v1269 = vpop.permute.xlu0 %1268
      %v1270 = vsel %vm388, %v1267, %v1269
      %v1271 = vsel %vm388, %v1265, %v1267
      %v1272 = vsel %vm388, %v1263, %v1265
      %v1273 = vsel %vm388, %v1269, %v1263
      %v1274 = vmul.f32 %v1273, %v399
      %v1275 = vmul.f32 %v1272, %v403
      %v1276 = vmul.f32 %v1271, %v407
      %v1277 = vmul.f32 %v1270, %v411
      %v1282 = vrot.slane %v1274, 4
      %v1283 = vrot.slane %v1275, 4
      %v1284 = vrot.slane %v1276, 4
      %v1285 = vrot.slane %v1277, 4
      %v1290 = vadd.f32 %v1250, %v1282
      %v1291 = vadd.f32 %v1251, %v1283
      %v1292 = vadd.f32 %v1252, %v1284
      %v1293 = vadd.f32 %v1253, %v1285
      %vm1298 = vcmask 1040384
      %v1299 = vrot.slane %v1009, 7
      %v1300 = vrot.slane %v1015, 7
      %v1301 = vsel %vm1298, %v1299, %v1300
      %v1302 = vrot.slane %v1011, 7
      %v1303 = vrot.slane %v1017, 7
      %v1304 = vsel %vm1298, %v1302, %v1303
      %v1305 = vrot.slane %v1098, 7
      %v1306 = vrot.slane %v1104, 7
      %v1307 = vsel %vm1298, %v1305, %v1306
      %v1308 = vrot.slane %v1100, 7
      %v1309 = vrot.slane %v1106, 7
      %v1310 = vsel %vm1298, %v1308, %v1309
      %1315 = vrot.lane.b32.xlu0 %v1301, 127
      %v1316 = vpop.permute.xlu0 %1315
      %1317 = vrot.lane.b32.xlu0 %v1304, 127
      %v1318 = vpop.permute.xlu0 %1317
      %1319 = vrot.lane.b32.xlu0 %v1307, 127
      %v1320 = vpop.permute.xlu0 %1319
      %1321 = vrot.lane.b32.xlu0 %v1310, 127
      %v1322 = vpop.permute.xlu0 %1321
      %v1323 = vsel %vm428, %v1320, %v1322
      %v1324 = vsel %vm428, %v1318, %v1320
      %v1325 = vsel %vm428, %v1316, %v1318
      %v1326 = vsel %vm428, %v1322, %v1316
      %v1327 = vmul.f32 %v1325, %v439
      %v1328 = vmul.f32 %v1324, %v443
      %v1329 = vmul.f32 %v1323, %v447
      %v1330 = vmul.f32 %v1326, %v451
      %v1335 = vrot.slane %v1327, 4
      %v1336 = vrot.slane %v1328, 4
      %v1337 = vrot.slane %v1329, 4
      %v1338 = vrot.slane %v1330, 4
      %v1343 = vadd.f32 %v1290, %v1335
      %v1344 = vadd.f32 %v1291, %v1336
      %v1345 = vadd.f32 %v1292, %v1337
      %v1346 = vadd.f32 %v1293, %v1338
      %v1347 = vrot.slane %v1015, 2
      %v1348 = vrot.slane %v1017, 2
      %v1349 = vrot.slane %v1104, 2
      %v1350 = vrot.slane %v1106, 2
      %1355 = vrot.lane.b32.xlu0 %v1347, 113
      %v1356 = vpop.permute.xlu0 %1355
      %1357 = vrot.lane.b32.xlu0 %v1348, 113
      %v1358 = vpop.permute.xlu0 %1357
      %1359 = vrot.lane.b32.xlu0 %v1349, 113
      %v1360 = vpop.permute.xlu0 %1359
      %1361 = vrot.lane.b32.xlu0 %v1350, 113
      %v1362 = vpop.permute.xlu0 %1361
      %v1363 = vsel %vm468, %v1360, %v1362
      %v1364 = vsel %vm468, %v1358, %v1360
      %v1365 = vsel %vm468, %v1356, %v1358
      %v1366 = vsel %vm468, %v1362, %v1356
      %v1367 = vmul.f32 %v1365, %v479
      %v1368 = vmul.f32 %v1364, %v483
      %v1369 = vmul.f32 %v1363, %v487
      %v1370 = vmul.f32 %v1366, %v491
      %v1375 = vrot.slane %v1367, 4
      %v1376 = vrot.slane %v1368, 4
      %v1377 = vrot.slane %v1369, 4
      %v1378 = vrot.slane %v1370, 4
      %v1383 = vadd.f32 %v1343, %v1375
      %v1384 = vadd.f32 %v1344, %v1376
      %v1385 = vadd.f32 %v1345, %v1377
      %v1386 = vadd.f32 %v1346, %v1378
      %v1387 = vrot.slane %v1015, 5
      %v1388 = vrot.slane %v1017, 5
      %v1389 = vrot.slane %v1104, 5
      %v1390 = vrot.slane %v1106, 5
      %1395 = vrot.lane.b32.xlu0 %v1387, 112
      %v1396 = vpop.permute.xlu0 %1395
      %1397 = vrot.lane.b32.xlu0 %v1388, 112
      %v1398 = vpop.permute.xlu0 %1397
      %1399 = vrot.lane.b32.xlu0 %v1389, 112
      %v1400 = vpop.permute.xlu0 %1399
      %1401 = vrot.lane.b32.xlu0 %v1390, 112
      %v1402 = vpop.permute.xlu0 %1401
      %v1403 = vsel %vm508, %v1400, %v1402
      %v1404 = vsel %vm508, %v1398, %v1400
      %v1405 = vsel %vm508, %v1396, %v1398
      %v1406 = vsel %vm508, %v1402, %v1396
      %v1407 = vmul.f32 %v1405, %v519
      %v1408 = vmul.f32 %v1404, %v523
      %v1409 = vmul.f32 %v1403, %v527
      %v1410 = vmul.f32 %v1406, %v531
      %v1415 = vrot.slane %v1407, 4
      %v1416 = vrot.slane %v1408, 4
      %v1417 = vrot.slane %v1409, 4
      %v1418 = vrot.slane %v1410, 4
      %v1423 = vadd.f32 %v1383, %v1415
      %v1424 = vadd.f32 %v1384, %v1416
      %v1425 = vadd.f32 %v1385, %v1417
      %v1426 = vadd.f32 %v1386, %v1418
      %1427 = vrot.lane.b32.xlu0 %v1021, 111
      %v1428 = vpop.permute.xlu0 %1427
      %1429 = vrot.lane.b32.xlu0 %v1023, 111
      %v1430 = vpop.permute.xlu0 %1429
      %1431 = vrot.lane.b32.xlu0 %v1110, 111
      %v1432 = vpop.permute.xlu0 %1431
      %1433 = vrot.lane.b32.xlu0 %v1112, 111
      %v1434 = vpop.permute.xlu0 %1433
      %v1435 = vsel %vm548, %v1432, %v1434
      %v1436 = vsel %vm548, %v1430, %v1432
      %v1437 = vsel %vm548, %v1428, %v1430
      %v1438 = vsel %vm548, %v1434, %v1428
      %v1439 = vmul.f32 %v1437, %v559
      %v1440 = vmul.f32 %v1436, %v563
      %v1441 = vmul.f32 %v1435, %v567
      %v1442 = vmul.f32 %v1438, %v571
      %v1447 = vrot.slane %v1439, 4
      %v1448 = vrot.slane %v1440, 4
      %v1449 = vrot.slane %v1441, 4
      %v1450 = vrot.slane %v1442, 4
      %v1455 = vadd.f32 %v1423, %v1447
      %v1456 = vadd.f32 %v1424, %v1448
      %v1457 = vadd.f32 %v1425, %v1449
      %v1458 = vadd.f32 %v1426, %v1450
      %v1461 = vcombine.high %v1455, %v1456
      %1463 = vst [vmem:[%s253] sm:$0x77] %v1461
      %v1466 = vcombine.high %v1457, %v1458
      %s1468 = scalar_lea.vmem %s253, 8
      %1469 = vst [vmem:[%s1468] sm:$0x77] %v1466
      %s1470 = smul.u32 2, %s17
      %p1471 = scmp.lt.s32.totalorder %s1470, 3
      %s1472 = scalar_select %p1471, %s1470, 3
      %s1473 = smul.addr %s1472, 2
      %s1474 = smul.addr %s1473, 4
      %s1475 = scalar_lea.vmem %s6, %s1474
      // Predicated region
      $region45: #{generator_forward.1} parent=43 // pred_check
        %p1476 = pneg %p166
      $region46: #{generator_forward.1} parent=43 // pred_check_branch
        %1478 = sbr.rel (%p1476) target = $region48
      $region47: #{generator_forward.1} parent=43 // pred_region
        %s1479 = smul.u32 2, %s17
      $region48: #{generator_forward.1} parent=43 // pred_fallthru
        _
    $region44: #{generator_forward.1} parent=5 // pred_fallthru
      _
    %p1480 = scmp.le.s32.totalorder 2, %s12
    // Predicated region
    $region49: #{generator_forward.1} parent=5 // pred_check
      %p1481 = pneg %p1480
    $region50: #{generator_forward.1} parent=5 // pred_check_branch
      %1483 = sbr.rel (%p1481) target = $region52
    $region51: #{generator_forward.1} parent=5 // pred_region
      %s1484 = ssub.s32 %s12, 2
      // Predicated region
      $region53: #{generator_forward.1} parent=51 // pred_check
        %p1485 = pneg %p172
      $region54: #{generator_forward.1} parent=51 // pred_check_branch
        %1487 = sbr.rel (%p1485) target = $region56
      $region55: #{generator_forward.1} parent=51 // pred_region
        %s1488 = smul.u32 2, %s18
        %p1489 = scmp.lt.s32.totalorder %s1488, 3
        %s1490 = scalar_select %p1489, %s1488, 3
        %s1491 = smul.addr %s1490, 2
        %s1492 = smul.addr %s1491, 4
        %s1493 = scalar_lea.vmem %s6, %s1492
      $region56: #{generator_forward.1} parent=51 // pred_fallthru
        _
    $region52: #{generator_forward.1} parent=5 // pred_fallthru
      _
  $region6: #{generator_forward.1} parent=0 // loop_footer
    %s16 = sadd.s32 1, %s12
  $region7: #{generator_forward.1} parent=0 // loop_footer_branch
    %11 = sbr.rel target = $region3
  $region8: #{generator_forward.1} parent=0 // loop_exit
    _

</llo_original>
